<compile_context>
chip_gen: v7x
topology: tpu7x:2x2x1
jax: 0.10.0
libtpu: 0.0.40
codegen_flags: <defaults>
</compile_context>

<pallas_src>
import jax
import jax.numpy as jnp
from jax.experimental import pallas as pl
from jax.experimental.pallas import tpu as pltpu


def _residual_block_kernel(x_ref, cond_ref, slab_d_ref, slab_q_ref, slab_kv_ref, o_ref):
    f32 = jnp.float32
    B, dim, L = x_ref.shape
    _, cond_dim, Lc = cond_ref.shape
    E = slab_q_ref.shape[1]
    BL = B * L
    d3 = 3 * dim

    # ---- unpack packed parameter slabs (static slices; one VMEM load per slab)
    slab_d = slab_d_ref[...]
    w1 = slab_d[0:d3]                        # (3*dim, dim): conv1 taps stacked [l-1; l; l+1]
    w2 = slab_d[d3:2 * d3]                   # (3*dim, dim)
    wo = slab_d[2 * d3:2 * d3 + E]           # (E, dim)
    r = 2 * d3 + E
    b1 = slab_d[r:r + 1]
    b2 = slab_d[r + 1:r + 2]
    bo = slab_d[r + 2:r + 3]
    gamma = slab_d[r + 3:r + 4]
    beta = slab_d[r + 4:r + 5]

    slab_q = slab_q_ref[...]
    wq = slab_q[0:dim]                       # (dim, E), softmax scale pre-folded
    bq = slab_q[dim:dim + 1]

    slab_kv = slab_kv_ref[...]
    wckv = slab_kv[0:cond_dim]               # (cond_dim, 2E) = wc @ wkv (folded chain)
    bckv = slab_kv[cond_dim:cond_dim + 1]    # (1, 2E)      = bc @ wkv + bkv

    # ---- NCW -> folded channel-last (B*L, C): one transpose + one reshape each
    x = x_ref[...].astype(f32).transpose(0, 2, 1).reshape(BL, dim)
    cond = cond_ref[...].astype(f32).transpose(0, 2, 1).reshape(B * Lc, cond_dim)

    # ---- Conv1d(k=3, pad=1) as ONE fused matmul over [h[l-1] | h[l] | h[l+1]].
    # A single XLU roll over all batches; rows that crossed a batch boundary are
    # exactly the zero-pad rows, masked with a broadcasted_iota predicate.
    row = jax.lax.broadcasted_iota(jnp.int32, (BL, 1), 0)
    first_row = (row % L) == 0
    last_row = (row % L) == (L - 1)

    def conv3(h, w_flat, b):
        dn = jnp.where(first_row, 0.0, pltpu.roll(h, 1, axis=0))       # h[l-1], zero at l==0
        up = jnp.where(last_row, 0.0, pltpu.roll(h, BL - 1, axis=0))   # h[l+1], zero at l==L-1
        taps = jnp.concatenate([dn, h, up], axis=-1)                   # (B*L, 3*dim)
        return jnp.dot(taps, w_flat, preferred_element_type=f32) + b

    h = jnp.maximum(conv3(x, w1, b1), 0.0)    # relu(conv1(x))
    h = conv3(h, w2, b2)                      # conv2(.)

    # ---- CrossAttention: q carries the folded softmax scale; cond -> [key|value]
    # is a single matmul (wc @ wkv folded wrapper-side).
    q = (jnp.dot(h, wq, preferred_element_type=f32) + bq).reshape(B, L, E)
    kv = (jnp.dot(cond, wckv, preferred_element_type=f32) + bckv).reshape(B, Lc, 2 * E)
    k, v = kv[..., :E], kv[..., E:]

    s = jnp.einsum("bqe,bke->bqk", q, k, preferred_element_type=f32)   # scale already in q
    s = s - jnp.max(s, axis=-1, keepdims=True)
    p = jnp.exp(s)
    attn = p / jnp.sum(p, axis=-1, keepdims=True)                      # exact softmax
    attn_out = jnp.einsum("bqk,bke->bqe", attn, v,
                          preferred_element_type=f32).reshape(BL, E)

    h = jnp.dot(attn_out, wo, preferred_element_type=f32) + bo + h     # attention residual
    z = h + x                                                          # block residual

    # ---- BatchNorm1d: training-mode batch statistics (biased var over B*L), eps=1e-5.
    mean = jnp.mean(z, axis=0, keepdims=True)
    var = jnp.mean((z - mean) ** 2, axis=0, keepdims=True)
    y = (z - mean) * jax.lax.rsqrt(var + 1e-5) * gamma + beta          # (B*L, dim)

    # ---- single NCW-native store (one transpose + one whole-output store)
    o_ref[...] = y.reshape(B, L, dim).transpose(0, 2, 1).astype(o_ref.dtype)


def residual_block(x_ncw, cond_ncw, params):
    """x_ncw: (B, dim, L), cond_ncw: (B, cond_dim, Lc) — PyTorch NCW layout in and out."""
    B, dim, L = x_ncw.shape
    E = params["wq"].shape[1]
    scale = jnp.float32(E) ** -0.5

    # Wrapper-side weight folds + packing (tiny, one-time relative to the kernel):
    w1 = params["conv1_w"].reshape(3 * dim, dim)
    w2 = params["conv2_w"].reshape(3 * dim, dim)
    wckv = params["wc"] @ params["wkv"]                      # fold cond_proj into key/value
    bckv = params["bc"] @ params["wkv"] + params["bkv"]
    slab_d = jnp.concatenate(
        [w1, w2, params["wo"], params["conv1_b"], params["conv2_b"],
         params["bo"], params["gamma"], params["beta"]], axis=0)       # (6*dim+E+5, dim)
    slab_q = jnp.concatenate([params["wq"] * scale, params["bq"] * scale], axis=0)  # (dim+1, E)
    slab_kv = jnp.concatenate([wckv, bckv], axis=0)                    # (cond_dim+1, 2E)

    vmem = pl.BlockSpec(memory_space=pltpu.MemorySpace.VMEM)
    return pl.pallas_call(
        _residual_block_kernel,
        out_shape=jax.ShapeDtypeStruct((B, dim, L), x_ncw.dtype),
        in_specs=[vmem] * 5,
        out_specs=vmem,
    )(x_ncw, cond_ncw, slab_d, slab_q, slab_kv)


def make_params(key, dim, cond_dim, embed_dim):
    """Deterministic synthetic parameters.  Conv1d(k=3) weight (out,in,3) is stored as
    (3, in, out); 1x1-conv weights as (in, out) matrices; key/value are fused (E, 2E)."""
    E = embed_dim
    ks = jax.random.split(key, 14)

    def w(k, fan_in, shape):
        return jax.random.normal(k, shape, jnp.float32) / jnp.sqrt(jnp.float32(fan_in))

    return {
        "conv1_w": w(ks[0], 3 * dim, (3, dim, dim)),
        "conv1_b": w(ks[1], 3 * dim, (1, dim)),
        "conv2_w": w(ks[2], 3 * dim, (3, dim, dim)),
        "conv2_b": w(ks[3], 3 * dim, (1, dim)),
        "wq": w(ks[4], dim, (dim, E)),
        "bq": w(ks[5], dim, (1, E)),
        "wc": w(ks[6], cond_dim, (cond_dim, E)),
        "bc": w(ks[7], cond_dim, (1, E)),
        "wkv": w(ks[8], E, (E, 2 * E)),      # [key | value] fused
        "bkv": w(ks[9], E, (1, 2 * E)),
        "wo": w(ks[10], E, (E, dim)),
        "bo": w(ks[11], E, (1, dim)),
        "gamma": 1.0 + 0.1 * jax.random.normal(ks[12], (1, dim), jnp.float32),
        "beta": 0.1 * jax.random.normal(ks[13], (1, dim), jnp.float32),
    }


def reference(x, cond, p):
    """Plain-JAX reference mirroring PyTorch ResidualBlock.forward exactly
    (BatchNorm1d in training mode, i.e. batch statistics, as for a fresh module)."""
    f32 = jnp.float32
    E = p["wq"].shape[1]

    def conv1d(h, w_kio, b):
        w_oiw = jnp.transpose(w_kio, (2, 1, 0))          # (3,in,out) -> (out,in,3)
        y = jax.lax.conv_general_dilated(h, w_oiw, (1,), [(1, 1)],
                                         dimension_numbers=("NCH", "OIH", "NCH"))
        return y + b.reshape(1, -1, 1)

    h = jax.nn.relu(conv1d(x, p["conv1_w"], p["conv1_b"]))
    h = conv1d(h, p["conv2_w"], p["conv2_b"])

    hx = jnp.transpose(h, (0, 2, 1))                     # (B, L, dim)
    cx = jnp.transpose(cond, (0, 2, 1))                  # (B, Lc, cond_dim)
    q = hx @ p["wq"] + p["bq"]
    cp = cx @ p["wc"] + p["bc"]
    kv = cp @ p["wkv"] + p["bkv"]
    k, v = kv[..., :E], kv[..., E:]
    scores = jnp.einsum("bqe,bke->bqk", q, k) / jnp.sqrt(f32(E))
    attn = jax.nn.softmax(scores, axis=-1)
    o = jnp.einsum("bqk,bke->bqe", attn, v)
    res = o @ p["wo"] + p["bo"] + hx                     # CrossAttention residual
    z = res + jnp.transpose(x, (0, 2, 1))                # ResidualBlock residual

    mean = jnp.mean(z, axis=(0, 1), keepdims=True)
    var = jnp.mean((z - mean) ** 2, axis=(0, 1), keepdims=True)
    out = (z - mean) / jnp.sqrt(var + 1e-5) * p["gamma"] + p["beta"]
    return jnp.transpose(out, (0, 2, 1))                 # back to NCW


if __name__ == "__main__":
    key = jax.random.PRNGKey(0)
    k_x, k_c, k_p = jax.random.split(key, 3)

    B, dim, cond_dim, embed_dim = 2, 4, 6, 32            # module default embed_dim=256; small for test
    L, Lc = 16, 8

    x = jax.random.normal(k_x, (B, dim, L), jnp.float32)           # NCW
    cond = jax.random.normal(k_c, (B, cond_dim, Lc), jnp.float32)  # NCW
    params = make_params(k_p, dim, cond_dim, embed_dim)

    out = residual_block(x, cond, params)
    jax.block_until_ready(out)

    ref = reference(x, cond, params)
    assert out.shape == (B, dim, L)
    err = float(jnp.max(jnp.abs(out - ref)))
    # Exact softmax restored; only weight-fold rounding remains -> tight tolerance.
    assert jnp.allclose(out, ref, atol=2e-4, rtol=2e-4), f"mismatch vs reference (max abs err {err})"

    print("KERNEL_OK")
</pallas_src>

<mosaic_0001>
module attributes {stable_mosaic.version = 11 : i64} {
  func.func @_residual_block_kernel(%arg0: memref<2x4x16xf32, #tpu.memory_space<vmem>>, %arg1: memref<2x6x8xf32, #tpu.memory_space<vmem>>, %arg2: memref<61x4xf32, #tpu.memory_space<vmem>>, %arg3: memref<5x32xf32, #tpu.memory_space<vmem>>, %arg4: memref<7x64xf32, #tpu.memory_space<vmem>>, %arg5: memref<2x4x16xf32, #tpu.memory_space<vmem>>) attributes {dimension_semantics = [], scalar_prefetch = 0 : i64, scratch_operands = 0 : i64, tpu.core_type = #tpu.core_type<tc>} {
    %c0 = arith.constant 0 : index
    %c0_0 = arith.constant 0 : index
    %0 = vector.load %arg2[%c0, %c0_0] : memref<61x4xf32, #tpu.memory_space<vmem>>, vector<61x4xf32>
    %1 = vector.extract_strided_slice %0 {offsets = [0, 0], sizes = [12, 4], strides = [1, 1]} : vector<61x4xf32> to vector<12x4xf32>
    %2 = vector.extract_strided_slice %0 {offsets = [12, 0], sizes = [12, 4], strides = [1, 1]} : vector<61x4xf32> to vector<12x4xf32>
    %3 = vector.extract_strided_slice %0 {offsets = [24, 0], sizes = [32, 4], strides = [1, 1]} : vector<61x4xf32> to vector<32x4xf32>
    %4 = vector.extract_strided_slice %0 {offsets = [56, 0], sizes = [1, 4], strides = [1, 1]} : vector<61x4xf32> to vector<1x4xf32>
    %5 = vector.extract_strided_slice %0 {offsets = [57, 0], sizes = [1, 4], strides = [1, 1]} : vector<61x4xf32> to vector<1x4xf32>
    %6 = vector.extract_strided_slice %0 {offsets = [58, 0], sizes = [1, 4], strides = [1, 1]} : vector<61x4xf32> to vector<1x4xf32>
    %7 = vector.extract_strided_slice %0 {offsets = [59, 0], sizes = [1, 4], strides = [1, 1]} : vector<61x4xf32> to vector<1x4xf32>
    %8 = vector.extract_strided_slice %0 {offsets = [60, 0], sizes = [1, 4], strides = [1, 1]} : vector<61x4xf32> to vector<1x4xf32>
    %c0_1 = arith.constant 0 : index
    %c0_2 = arith.constant 0 : index
    %9 = vector.load %arg3[%c0_1, %c0_2] : memref<5x32xf32, #tpu.memory_space<vmem>>, vector<5x32xf32>
    %10 = vector.extract_strided_slice %9 {offsets = [0, 0], sizes = [4, 32], strides = [1, 1]} : vector<5x32xf32> to vector<4x32xf32>
    %11 = vector.extract_strided_slice %9 {offsets = [4, 0], sizes = [1, 32], strides = [1, 1]} : vector<5x32xf32> to vector<1x32xf32>
    %c0_3 = arith.constant 0 : index
    %c0_4 = arith.constant 0 : index
    %12 = vector.load %arg4[%c0_3, %c0_4] : memref<7x64xf32, #tpu.memory_space<vmem>>, vector<7x64xf32>
    %13 = vector.extract_strided_slice %12 {offsets = [0, 0], sizes = [6, 64], strides = [1, 1]} : vector<7x64xf32> to vector<6x64xf32>
    %14 = vector.extract_strided_slice %12 {offsets = [6, 0], sizes = [1, 64], strides = [1, 1]} : vector<7x64xf32> to vector<1x64xf32>
    %c0_5 = arith.constant 0 : index
    %c0_6 = arith.constant 0 : index
    %c0_7 = arith.constant 0 : index
    %15 = vector.load %arg0[%c0_5, %c0_6, %c0_7] : memref<2x4x16xf32, #tpu.memory_space<vmem>>, vector<2x4x16xf32>
    %16 = tpu.transpose %15, [0, 2, 1] : vector<2x4x16xf32> -> vector<2x16x4xf32>
    %17 = vector.shape_cast %16 : vector<2x16x4xf32> to vector<32x4xf32>
    %c0_8 = arith.constant 0 : index
    %c0_9 = arith.constant 0 : index
    %c0_10 = arith.constant 0 : index
    %18 = vector.load %arg1[%c0_8, %c0_9, %c0_10] : memref<2x6x8xf32, #tpu.memory_space<vmem>>, vector<2x6x8xf32>
    %19 = tpu.transpose %18, [0, 2, 1] : vector<2x6x8xf32> -> vector<2x8x6xf32>
    %20 = vector.shape_cast %19 : vector<2x8x6xf32> to vector<16x6xf32>
    %21 = tpu.iota {dimensions = array<i32: 0>} : vector<32x1xi32>
    %c16_i32 = arith.constant 16 : i32
    %c0_i32 = arith.constant 0 : i32
    %22 = arith.cmpi eq, %c16_i32, %c0_i32 : i32
    %c1_i32 = arith.constant 1 : i32
    %23 = arith.select %22, %c1_i32, %c16_i32 : i32
    %24 = vector.broadcast %23 : i32 to vector<32x1xi32>
    %25 = arith.remsi %21, %24 : vector<32x1xi32>
    %c0_i32_11 = arith.constant 0 : i32
    %26 = vector.broadcast %c0_i32_11 : i32 to vector<32x1xi32>
    %27 = arith.cmpi ne, %25, %26 : vector<32x1xi32>
    %c0_i32_12 = arith.constant 0 : i32
    %28 = vector.broadcast %c0_i32_12 : i32 to vector<32x1xi32>
    %29 = arith.cmpi slt, %25, %28 : vector<32x1xi32>
    %c0_i32_13 = arith.constant 0 : i32
    %30 = arith.cmpi slt, %23, %c0_i32_13 : i32
    %31 = vector.broadcast %30 : i1 to vector<32x1xi1>
    %32 = vector.broadcast %31 : vector<32x1xi1> to vector<32x1xi1>
    %33 = arith.xori %29, %32 : vector<32x1xi1>
    %34 = arith.andi %33, %27 : vector<32x1xi1>
    %35 = vector.broadcast %23 : i32 to vector<32x1xi32>
    %36 = arith.addi %25, %35 : vector<32x1xi32>
    %37 = arith.select %34, %36, %25 : vector<32x1xi1>, vector<32x1xi32>
    %c0_i32_14 = arith.constant 0 : i32
    %38 = vector.broadcast %c0_i32_14 : i32 to vector<32x1xi32>
    %39 = arith.cmpi eq, %37, %38 : vector<32x1xi32>
    %c16_i32_15 = arith.constant 16 : i32
    %c0_i32_16 = arith.constant 0 : i32
    %40 = arith.cmpi eq, %c16_i32_15, %c0_i32_16 : i32
    %c1_i32_17 = arith.constant 1 : i32
    %41 = arith.select %40, %c1_i32_17, %c16_i32_15 : i32
    %42 = vector.broadcast %41 : i32 to vector<32x1xi32>
    %43 = arith.remsi %21, %42 : vector<32x1xi32>
    %c0_i32_18 = arith.constant 0 : i32
    %44 = vector.broadcast %c0_i32_18 : i32 to vector<32x1xi32>
    %45 = arith.cmpi ne, %43, %44 : vector<32x1xi32>
    %c0_i32_19 = arith.constant 0 : i32
    %46 = vector.broadcast %c0_i32_19 : i32 to vector<32x1xi32>
    %47 = arith.cmpi slt, %43, %46 : vector<32x1xi32>
    %c0_i32_20 = arith.constant 0 : i32
    %48 = arith.cmpi slt, %41, %c0_i32_20 : i32
    %49 = vector.broadcast %48 : i1 to vector<32x1xi1>
    %50 = vector.broadcast %49 : vector<32x1xi1> to vector<32x1xi1>
    %51 = arith.xori %47, %50 : vector<32x1xi1>
    %52 = arith.andi %51, %45 : vector<32x1xi1>
    %53 = vector.broadcast %41 : i32 to vector<32x1xi32>
    %54 = arith.addi %43, %53 : vector<32x1xi32>
    %55 = arith.select %52, %54, %43 : vector<32x1xi1>, vector<32x1xi32>
    %c15_i32 = arith.constant 15 : i32
    %56 = vector.broadcast %c15_i32 : i32 to vector<32x1xi32>
    %57 = arith.cmpi eq, %55, %56 : vector<32x1xi32>
    %c1_i32_21 = arith.constant 1 : i32
    %58 = tpu.dynamic_rotate %17 by %c1_i32_21 dim 0 : vector<32x4xf32>, i32 -> vector<32x4xf32>
    %cst = arith.constant 0.000000e+00 : f32
    %59 = vector.shape_cast %39 : vector<32x1xi1> to vector<32x1xi1>
    %60 = vector.broadcast %59 : vector<32x1xi1> to vector<32x4xi1>
    %61 = vector.broadcast %cst : f32 to vector<32x4xf32>
    %62 = arith.select %60, %61, %58 : vector<32x4xi1>, vector<32x4xf32>
    %c31_i32 = arith.constant 31 : i32
    %63 = tpu.dynamic_rotate %17 by %c31_i32 dim 0 : vector<32x4xf32>, i32 -> vector<32x4xf32>
    %cst_22 = arith.constant 0.000000e+00 : f32
    %64 = vector.shape_cast %57 : vector<32x1xi1> to vector<32x1xi1>
    %65 = vector.broadcast %64 : vector<32x1xi1> to vector<32x4xi1>
    %66 = vector.broadcast %cst_22 : f32 to vector<32x4xf32>
    %67 = arith.select %65, %66, %63 : vector<32x4xi1>, vector<32x4xf32>
    %68 = tpu.concatenate %62, %17, %67 in 1 : vector<32x4xf32>, vector<32x4xf32>, vector<32x4xf32> -> vector<32x12xf32>
    %cst_23 = arith.constant dense<0.000000e+00> : vector<32x4xf32>
    %69 = tpu.matmul %68, %1, %cst_23 {dimension_numbers = #tpu.dot_dimension_numbers<[1], [0], [0], [1], [0, 0, 1, 1], [], []>} : vector<32x12xf32>, vector<12x4xf32>, vector<32x4xf32> -> vector<32x4xf32>
    %70 = vector.broadcast %4 : vector<1x4xf32> to vector<32x4xf32>
    %71 = arith.addf %69, %70 : vector<32x4xf32>
    %cst_24 = arith.constant 0.000000e+00 : f32
    %72 = vector.broadcast %cst_24 : f32 to vector<32x4xf32>
    %73 = arith.maximumf %71, %72 : vector<32x4xf32>
    %c1_i32_25 = arith.constant 1 : i32
    %74 = tpu.dynamic_rotate %73 by %c1_i32_25 dim 0 : vector<32x4xf32>, i32 -> vector<32x4xf32>
    %cst_26 = arith.constant 0.000000e+00 : f32
    %75 = vector.shape_cast %39 : vector<32x1xi1> to vector<32x1xi1>
    %76 = vector.broadcast %75 : vector<32x1xi1> to vector<32x4xi1>
    %77 = vector.broadcast %cst_26 : f32 to vector<32x4xf32>
    %78 = arith.select %76, %77, %74 : vector<32x4xi1>, vector<32x4xf32>
    %c31_i32_27 = arith.constant 31 : i32
    %79 = tpu.dynamic_rotate %73 by %c31_i32_27 dim 0 : vector<32x4xf32>, i32 -> vector<32x4xf32>
    %cst_28 = arith.constant 0.000000e+00 : f32
    %80 = vector.shape_cast %57 : vector<32x1xi1> to vector<32x1xi1>
    %81 = vector.broadcast %80 : vector<32x1xi1> to vector<32x4xi1>
    %82 = vector.broadcast %cst_28 : f32 to vector<32x4xf32>
    %83 = arith.select %81, %82, %79 : vector<32x4xi1>, vector<32x4xf32>
    %84 = tpu.concatenate %78, %73, %83 in 1 : vector<32x4xf32>, vector<32x4xf32>, vector<32x4xf32> -> vector<32x12xf32>
    %cst_29 = arith.constant dense<0.000000e+00> : vector<32x4xf32>
    %85 = tpu.matmul %84, %2, %cst_29 {dimension_numbers = #tpu.dot_dimension_numbers<[1], [0], [0], [1], [0, 0, 1, 1], [], []>} : vector<32x12xf32>, vector<12x4xf32>, vector<32x4xf32> -> vector<32x4xf32>
    %86 = vector.broadcast %5 : vector<1x4xf32> to vector<32x4xf32>
    %87 = arith.addf %85, %86 : vector<32x4xf32>
    %cst_30 = arith.constant dense<0.000000e+00> : vector<32x32xf32>
    %88 = tpu.matmul %87, %10, %cst_30 {dimension_numbers = #tpu.dot_dimension_numbers<[1], [0], [0], [1], [0, 0, 1, 1], [], []>} : vector<32x4xf32>, vector<4x32xf32>, vector<32x32xf32> -> vector<32x32xf32>
    %89 = vector.broadcast %11 : vector<1x32xf32> to vector<32x32xf32>
    %90 = arith.addf %88, %89 : vector<32x32xf32>
    %91 = vector.shape_cast %90 : vector<32x32xf32> to vector<2x16x32xf32>
    %cst_31 = arith.constant dense<0.000000e+00> : vector<16x64xf32>
    %92 = tpu.matmul %20, %13, %cst_31 {dimension_numbers = #tpu.dot_dimension_numbers<[1], [0], [0], [1], [0, 0, 1, 1], [], []>} : vector<16x6xf32>, vector<6x64xf32>, vector<16x64xf32> -> vector<16x64xf32>
    %93 = vector.broadcast %14 : vector<1x64xf32> to vector<16x64xf32>
    %94 = arith.addf %92, %93 : vector<16x64xf32>
    %95 = vector.shape_cast %94 : vector<16x64xf32> to vector<2x8x64xf32>
    %96 = vector.extract_strided_slice %95 {offsets = [0, 0, 0], sizes = [2, 8, 32], strides = [1, 1, 1]} : vector<2x8x64xf32> to vector<2x8x32xf32>
    %97 = vector.extract_strided_slice %95 {offsets = [0, 0, 32], sizes = [2, 8, 32], strides = [1, 1, 1]} : vector<2x8x64xf32> to vector<2x8x32xf32>
    "tpu.trace_start"() <{level = 10 : i32, message = "bqe,bke->bqk"}> : () -> ()
    %cst_32 = arith.constant dense<0.000000e+00> : vector<2x16x8xf32>
    %98 = tpu.matmul %91, %96, %cst_32 {dimension_numbers = #tpu.dot_dimension_numbers<[2], [2], [1], [1], [0, 0, 0, 1, 1, 1], [0], [0]>} : vector<2x16x32xf32>, vector<2x8x32xf32>, vector<2x16x8xf32> -> vector<2x16x8xf32>
    "tpu.trace_stop"() : () -> ()
    %cst_33 = arith.constant dense<0xFF800000> : vector<2x16xf32>
    %99 = vector.multi_reduction <maximumf>, %98, %cst_33 [2] : vector<2x16x8xf32> to vector<2x16xf32>
    %100 = vector.shape_cast %99 : vector<2x16xf32> to vector<2x16x1xf32>
    %101 = vector.broadcast %100 : vector<2x16x1xf32> to vector<2x16x8xf32>
    %102 = arith.subf %98, %101 : vector<2x16x8xf32>
    %103 = math.exp %102 : vector<2x16x8xf32>
    %cst_34 = arith.constant dense<0.000000e+00> : vector<2x16xf32>
    %104 = vector.multi_reduction <add>, %103, %cst_34 [2] : vector<2x16x8xf32> to vector<2x16xf32>
    %105 = vector.shape_cast %104 : vector<2x16xf32> to vector<2x16x1xf32>
    %106 = vector.broadcast %105 : vector<2x16x1xf32> to vector<2x16x8xf32>
    %107 = arith.divf %103, %106 : vector<2x16x8xf32>
    "tpu.trace_start"() <{level = 10 : i32, message = "bqk,bke->bqe"}> : () -> ()
    %cst_35 = arith.constant dense<0.000000e+00> : vector<2x16x32xf32>
    %108 = tpu.matmul %107, %97, %cst_35 {dimension_numbers = #tpu.dot_dimension_numbers<[2], [1], [1], [2], [0, 0, 0, 1, 1, 2], [0], [0]>} : vector<2x16x8xf32>, vector<2x8x32xf32>, vector<2x16x32xf32> -> vector<2x16x32xf32>
    "tpu.trace_stop"() : () -> ()
    %109 = vector.shape_cast %108 : vector<2x16x32xf32> to vector<32x32xf32>
    %cst_36 = arith.constant dense<0.000000e+00> : vector<32x4xf32>
    %110 = tpu.matmul %109, %3, %cst_36 {dimension_numbers = #tpu.dot_dimension_numbers<[1], [0], [0], [1], [0, 0, 1, 1], [], []>} : vector<32x32xf32>, vector<32x4xf32>, vector<32x4xf32> -> vector<32x4xf32>
    %111 = vector.broadcast %6 : vector<1x4xf32> to vector<32x4xf32>
    %112 = arith.addf %110, %111 : vector<32x4xf32>
    %113 = arith.addf %112, %87 : vector<32x4xf32>
    %114 = arith.addf %113, %17 : vector<32x4xf32>
    %cst_37 = arith.constant dense<0.000000e+00> : vector<4xf32>
    %115 = vector.multi_reduction <add>, %114, %cst_37 [0] : vector<32x4xf32> to vector<4xf32>
    %116 = vector.shape_cast %115 : vector<4xf32> to vector<1x4xf32>
    %cst_38 = arith.constant 3.200000e+01 : f32
    %117 = vector.broadcast %cst_38 : f32 to vector<1x4xf32>
    %118 = arith.divf %116, %117 : vector<1x4xf32>
    %119 = vector.broadcast %118 : vector<1x4xf32> to vector<32x4xf32>
    %120 = arith.subf %114, %119 : vector<32x4xf32>
    %121 = arith.mulf %120, %120 : vector<32x4xf32>
    %cst_39 = arith.constant dense<0.000000e+00> : vector<4xf32>
    %122 = vector.multi_reduction <add>, %121, %cst_39 [0] : vector<32x4xf32> to vector<4xf32>
    %123 = vector.shape_cast %122 : vector<4xf32> to vector<1x4xf32>
    %cst_40 = arith.constant 3.200000e+01 : f32
    %124 = vector.broadcast %cst_40 : f32 to vector<1x4xf32>
    %125 = arith.divf %123, %124 : vector<1x4xf32>
    %126 = vector.broadcast %118 : vector<1x4xf32> to vector<32x4xf32>
    %127 = arith.subf %114, %126 : vector<32x4xf32>
    %cst_41 = arith.constant 9.99999974E-6 : f32
    %128 = vector.broadcast %cst_41 : f32 to vector<1x4xf32>
    %129 = arith.addf %125, %128 : vector<1x4xf32>
    %130 = math.rsqrt %129 : vector<1x4xf32>
    %131 = vector.broadcast %130 : vector<1x4xf32> to vector<32x4xf32>
    %132 = arith.mulf %127, %131 : vector<32x4xf32>
    %133 = vector.broadcast %7 : vector<1x4xf32> to vector<32x4xf32>
    %134 = arith.mulf %132, %133 : vector<32x4xf32>
    %135 = vector.broadcast %8 : vector<1x4xf32> to vector<32x4xf32>
    %136 = arith.addf %134, %135 : vector<32x4xf32>
    %137 = vector.shape_cast %136 : vector<32x4xf32> to vector<2x16x4xf32>
    %138 = tpu.transpose %137, [0, 2, 1] : vector<2x16x4xf32> -> vector<2x4x16xf32>
    %c0_42 = arith.constant 0 : index
    %c0_43 = arith.constant 0 : index
    %c0_44 = arith.constant 0 : index
    %139 = vector.load %arg5[%c0_42, %c0_43, %c0_44] : memref<2x4x16xf32, #tpu.memory_space<vmem>>, vector<2x4x16xf32>
    tpu.vector_store %arg5[%c0_42, %c0_43, %c0_44], %138 {strides = array<i32>} : memref<2x4x16xf32, #tpu.memory_space<vmem>>, vector<2x4x16xf32>,
    return
  }
}

</mosaic_0001>

<llo_original>
// kernel: tpu_custom_call.1
$region0: #{tpu_custom_call.1}
  #allocation0 [shape = 'u32[]', space=smem, size = 0x4, offset = 0x4, fixed_abs, tag = 'smem constant byte address 0x4 - core index']
  #allocation1 [shape = 'u32[144,128]{1,0:T(1,128)}', space=vmem, size = 0x12000, scoped, tag = 'internal scratch']
  %s0 = inlined_call_operand.vmem [shape: f32[2,4,16], index: 0, kind: input, shape index: {}]
  %s1 = inlined_call_operand.vmem [shape: f32[2,6,8], index: 1, kind: input, shape index: {}]
  %s2 = inlined_call_operand.vmem [shape: f32[61,4], index: 2, kind: input, shape index: {}]
  %s3 = inlined_call_operand.vmem [shape: f32[5,32], index: 3, kind: input, shape index: {}]
  %s4 = inlined_call_operand.vmem [shape: f32[7,64], index: 4, kind: input, shape index: {}]
  %s5 = inlined_call_operand.hbm [shape: f32[2,4,16], index: 5, kind: output, shape index: {}]
  %s6 = sld [smem:[#allocation0]]
  $region30: #{tpu_custom_call.1} parent=0
    _
  %s8 = ssub.s32 1, %s6
  %s9 = scalar_select 0, %s8, %s6
  $region1: #{tpu_custom_call.1} parent=0
    #allocation2 [shape = 'u8[4096]{0}', space=vmem, size = 0x1000, scoped, tag = 'output window, operand 0, single buffered']
    #allocation3 [shape = 's32[1]{0}', space=sflag, size = 0x4, scoped, tag = 'scoped memory for tpu_custom_call.1']
    %10 = vsyncpa [#allocation3], 0
    // Predicated region
    $region2: #{tpu_custom_call.1} parent=1 // pred_check
      _
    $region3: #{tpu_custom_call.1} parent=1 // pred_check_branch
      %12 = sbr.rel (0) target = $region5
    $region4: #{tpu_custom_call.1} parent=1 // pred_region
      _
    $region5: #{tpu_custom_call.1} parent=1 // pred_fallthru
      _
    // Predicated region
    $region6: #{tpu_custom_call.1} parent=1 // pred_check
      _
    $region7: #{tpu_custom_call.1} parent=1 // pred_check_branch
      %14 = sbr.rel (0) target = $region9
    $region8: #{tpu_custom_call.1} parent=1 // pred_region
      _
    $region9: #{tpu_custom_call.1} parent=1 // pred_fallthru
      _
    // Predicated region
    $region10: #{tpu_custom_call.1} parent=1 // pred_check
      _
    $region11: #{tpu_custom_call.1} parent=1 // pred_check_branch
      %16 = sbr.rel (0) target = $region13
    $region12: #{tpu_custom_call.1} parent=1 // pred_region
      _
    $region13: #{tpu_custom_call.1} parent=1 // pred_fallthru
      _
    // Predicated region
    $region14: #{tpu_custom_call.1} parent=1 // pred_check
      _
    $region15: #{tpu_custom_call.1} parent=1 // pred_check_branch
      %18 = sbr.rel (0) target = $region17
    $region16: #{tpu_custom_call.1} parent=1 // pred_region
      _
    $region17: #{tpu_custom_call.1} parent=1 // pred_fallthru
      _
    // Predicated region
    $region18: #{tpu_custom_call.1} parent=1 // pred_check
      _
    $region19: #{tpu_custom_call.1} parent=1 // pred_check_branch
      %20 = sbr.rel (0) target = $region21
    $region20: #{tpu_custom_call.1} parent=1 // pred_region
      _
    $region21: #{tpu_custom_call.1} parent=1 // pred_fallthru
      _
    %v21 = vld [vmem:[%s2] sm:$0xff]
    %v22 = vld [vmem:[%s2 + $0x8] sm:$0xff]
    %v23 = vld [vmem:[%s2 + $0x10] sm:$0xff]
    %v24 = vld [vmem:[%s2 + $0x18] sm:$0xff]
    %v25 = vld [vmem:[%s2 + $0x20] sm:$0xff]
    %v26 = vld [vmem:[%s2 + $0x28] sm:$0xff]
    %v27 = vld [vmem:[%s2 + $0x30] sm:$0xff]
    %v28 = vld [vmem:[%s2 + $0x38] sm:$0x1f]
    %v29 = vld [vmem:[%s3] sm:$0x1f]
    %v30 = vld [vmem:[%s4] sm:$0x7f]
    %v31 = vld [vmem:[%s0] sm:$0xf]
    %v32 = vld [vmem:[%s0 + $0x4] sm:$0xf]
    %33 = vxpose.xlu0.b32.start [1/16] %v31, 128
    %34 = vxpose.xlu0.b32.cont [2/16] 0.0, 128
    %35 = vxpose.xlu0.b32.cont [3/16] 0.0, 128
    %36 = vxpose.xlu0.b32.cont [4/16] 0.0, 128
    %37 = vxpose.xlu0.b32.cont [5/16] 0.0, 128
    %38 = vxpose.xlu0.b32.cont [6/16] 0.0, 128
    %39 = vxpose.xlu0.b32.cont [7/16] 0.0, 128
    %40 = vxpose.xlu0.b32.cont [8/16] 0.0, 128
    %41 = vxpose.xlu0.b32.cont [9/16] 0.0, 128
    %42 = vxpose.xlu0.b32.cont [10/16] 0.0, 128
    %43 = vxpose.xlu0.b32.cont [11/16] 0.0, 128
    %44 = vxpose.xlu0.b32.cont [12/16] 0.0, 128
    %45 = vxpose.xlu0.b32.cont [13/16] 0.0, 128
    %46 = vxpose.xlu0.b32.cont [14/16] 0.0, 128
    %47 = vxpose.xlu0.b32.cont [15/16] 0.0, 128
    %48 = vxpose.xlu0.b32.end [16/16] 0.0, 128
    %v49 = vpop.trf.xlu0
    %v50 = vpop.trf.xlu0
    %v51 = vpop.trf.xlu0
    %v52 = vpop.trf.xlu0
    %v53 = vpop.trf.xlu0
    %v54 = vpop.trf.xlu0
    %v55 = vpop.trf.xlu0
    %v56 = vpop.trf.xlu0
    %v57 = vpop.trf.xlu0
    %v58 = vpop.trf.xlu0
    %v59 = vpop.trf.xlu0
    %v60 = vpop.trf.xlu0
    %v61 = vpop.trf.xlu0
    %v62 = vpop.trf.xlu0
    %v63 = vpop.trf.xlu0
    %v64 = vpop.trf.xlu0
    %65 = vxpose.xlu0.b32.start [1/16] %v32, 128
    %66 = vxpose.xlu0.b32.cont [2/16] 0.0, 128
    %67 = vxpose.xlu0.b32.cont [3/16] 0.0, 128
    %68 = vxpose.xlu0.b32.cont [4/16] 0.0, 128
    %69 = vxpose.xlu0.b32.cont [5/16] 0.0, 128
    %70 = vxpose.xlu0.b32.cont [6/16] 0.0, 128
    %71 = vxpose.xlu0.b32.cont [7/16] 0.0, 128
    %72 = vxpose.xlu0.b32.cont [8/16] 0.0, 128
    %73 = vxpose.xlu0.b32.cont [9/16] 0.0, 128
    %74 = vxpose.xlu0.b32.cont [10/16] 0.0, 128
    %75 = vxpose.xlu0.b32.cont [11/16] 0.0, 128
    %76 = vxpose.xlu0.b32.cont [12/16] 0.0, 128
    %77 = vxpose.xlu0.b32.cont [13/16] 0.0, 128
    %78 = vxpose.xlu0.b32.cont [14/16] 0.0, 128
    %79 = vxpose.xlu0.b32.cont [15/16] 0.0, 128
    %80 = vxpose.xlu0.b32.end [16/16] 0.0, 128
    %v81 = vpop.trf.xlu0
    %v82 = vpop.trf.xlu0
    %v83 = vpop.trf.xlu0
    %v84 = vpop.trf.xlu0
    %v85 = vpop.trf.xlu0
    %v86 = vpop.trf.xlu0
    %v87 = vpop.trf.xlu0
    %v88 = vpop.trf.xlu0
    %v89 = vpop.trf.xlu0
    %v90 = vpop.trf.xlu0
    %v91 = vpop.trf.xlu0
    %v92 = vpop.trf.xlu0
    %v93 = vpop.trf.xlu0
    %v94 = vpop.trf.xlu0
    %v95 = vpop.trf.xlu0
    %v96 = vpop.trf.xlu0
    %v97 = vld [vmem:[%s1] sm:$0x3f]
    %v98 = vld [vmem:[%s1 + $0x8] sm:$0x3f]
    %99 = vxpose.xlu0.b32.start [1/16] %v97, 128
    %100 = vxpose.xlu0.b32.cont [2/16] 0.0, 128
    %101 = vxpose.xlu0.b32.cont [3/16] 0.0, 128
    %102 = vxpose.xlu0.b32.cont [4/16] 0.0, 128
    %103 = vxpose.xlu0.b32.cont [5/16] 0.0, 128
    %104 = vxpose.xlu0.b32.cont [6/16] 0.0, 128
    %105 = vxpose.xlu0.b32.cont [7/16] 0.0, 128
    %106 = vxpose.xlu0.b32.cont [8/16] 0.0, 128
    %107 = vxpose.xlu0.b32.cont [9/16] 0.0, 128
    %108 = vxpose.xlu0.b32.cont [10/16] 0.0, 128
    %109 = vxpose.xlu0.b32.cont [11/16] 0.0, 128
    %110 = vxpose.xlu0.b32.cont [12/16] 0.0, 128
    %111 = vxpose.xlu0.b32.cont [13/16] 0.0, 128
    %112 = vxpose.xlu0.b32.cont [14/16] 0.0, 128
    %113 = vxpose.xlu0.b32.cont [15/16] 0.0, 128
    %114 = vxpose.xlu0.b32.end [16/16] 0.0, 128
    %v115 = vpop.trf.xlu0
    %v116 = vpop.trf.xlu0
    %v117 = vpop.trf.xlu0
    %v118 = vpop.trf.xlu0
    %v119 = vpop.trf.xlu0
    %v120 = vpop.trf.xlu0
    %v121 = vpop.trf.xlu0
    %v122 = vpop.trf.xlu0
    %v123 = vpop.trf.xlu0
    %v124 = vpop.trf.xlu0
    %v125 = vpop.trf.xlu0
    %v126 = vpop.trf.xlu0
    %v127 = vpop.trf.xlu0
    %v128 = vpop.trf.xlu0
    %v129 = vpop.trf.xlu0
    %v130 = vpop.trf.xlu0
    %131 = vxpose.xlu0.b32.start [1/16] %v98, 128
    %132 = vxpose.xlu0.b32.cont [2/16] 0.0, 128
    %133 = vxpose.xlu0.b32.cont [3/16] 0.0, 128
    %134 = vxpose.xlu0.b32.cont [4/16] 0.0, 128
    %135 = vxpose.xlu0.b32.cont [5/16] 0.0, 128
    %136 = vxpose.xlu0.b32.cont [6/16] 0.0, 128
    %137 = vxpose.xlu0.b32.cont [7/16] 0.0, 128
    %138 = vxpose.xlu0.b32.cont [8/16] 0.0, 128
    %139 = vxpose.xlu0.b32.cont [9/16] 0.0, 128
    %140 = vxpose.xlu0.b32.cont [10/16] 0.0, 128
    %141 = vxpose.xlu0.b32.cont [11/16] 0.0, 128
    %142 = vxpose.xlu0.b32.cont [12/16] 0.0, 128
    %143 = vxpose.xlu0.b32.cont [13/16] 0.0, 128
    %144 = vxpose.xlu0.b32.cont [14/16] 0.0, 128
    %145 = vxpose.xlu0.b32.cont [15/16] 0.0, 128
    %146 = vxpose.xlu0.b32.end [16/16] 0.0, 128
    %v147 = vpop.trf.xlu0
    %v148 = vpop.trf.xlu0
    %v149 = vpop.trf.xlu0
    %v150 = vpop.trf.xlu0
    %v151 = vpop.trf.xlu0
    %v152 = vpop.trf.xlu0
    %v153 = vpop.trf.xlu0
    %v154 = vpop.trf.xlu0
    %v155 = vpop.trf.xlu0
    %v156 = vpop.trf.xlu0
    %v157 = vpop.trf.xlu0
    %v158 = vpop.trf.xlu0
    %v159 = vpop.trf.xlu0
    %v160 = vpop.trf.xlu0
    %v161 = vpop.trf.xlu0
    %v162 = vpop.trf.xlu0
    %v163 = vlaneseq
    %v164 = vshrl.u32 %v163, 7
    %v165 = vadd.s32 %v164, 8
    %v166 = vadd.s32 %v164, 16
    %v167 = vadd.s32 %v164, 24
    %vm168 = vcmp.lt.s32.totalorder %v164, 0
    %v169 = vsub.s32 0, %v164
    %v170 = vsel %vm168, %v169, %v164
    %v171 = vshrl.u32 %v170, 4
    %v172 = vand.u32 %v170, 15
    %v173 = vsub.s32 0, %v172
    %v174 = vsel %vm168, %v173, %v172
    %vm175 = vcmp.lt.s32.totalorder %v165, 0
    %v176 = vsub.s32 0, %v165
    %v177 = vsel %vm175, %v176, %v165
    %v178 = vshrl.u32 %v177, 4
    %v179 = vand.u32 %v177, 15
    %v180 = vsub.s32 0, %v179
    %v181 = vsel %vm175, %v180, %v179
    %vm182 = vcmp.lt.s32.totalorder %v166, 0
    %v183 = vsub.s32 0, %v166
    %v184 = vsel %vm182, %v183, %v166
    %v185 = vshrl.u32 %v184, 4
    %v186 = vand.u32 %v184, 15
    %v187 = vsub.s32 0, %v186
    %v188 = vsel %vm182, %v187, %v186
    %vm189 = vcmp.lt.s32.totalorder %v167, 0
    %v190 = vsub.s32 0, %v167
    %v191 = vsel %vm189, %v190, %v167
    %v192 = vshrl.u32 %v191, 4
    %v193 = vand.u32 %v191, 15
    %v194 = vsub.s32 0, %v193
    %v195 = vsel %vm189, %v194, %v193
    %vm196 = vcmp.ne.s32.totalorder %v174, 0
    %vm197 = vcmp.ne.s32.totalorder %v181, 0
    %vm198 = vcmp.ne.s32.totalorder %v188, 0
    %vm199 = vcmp.ne.s32.totalorder %v195, 0
    %vm200 = vcmp.lt.s32.totalorder %v174, 0
    %vm201 = vcmp.lt.s32.totalorder %v181, 0
    %vm202 = vcmp.lt.s32.totalorder %v188, 0
    %vm203 = vcmp.lt.s32.totalorder %v195, 0
    %vm204 = vmand %vm200, %vm196
    %vm205 = vmand %vm201, %vm197
    %vm206 = vmand %vm202, %vm198
    %vm207 = vmand %vm203, %vm199
    %v208 = vadd.s32 %v174, 16
    %v209 = vadd.s32 %v181, 16
    %v210 = vadd.s32 %v188, 16
    %v211 = vadd.s32 %v195, 16
    %v212 = vsel %vm204, %v208, %v174
    %v213 = vsel %vm205, %v209, %v181
    %v214 = vsel %vm206, %v210, %v188
    %v215 = vsel %vm207, %v211, %v195
    %vm216 = vcmp.eq.s32.totalorder %v212, 0
    %vm217 = vcmp.eq.s32.totalorder %v213, 0
    %vm218 = vcmp.eq.s32.totalorder %v214, 0
    %vm219 = vcmp.eq.s32.totalorder %v215, 0
    %vm220 = vcmp.eq.s32.totalorder %v212, 15
    %vm221 = vcmp.eq.s32.totalorder %v213, 15
    %vm222 = vcmp.eq.s32.totalorder %v214, 15
    %vm223 = vcmp.eq.s32.totalorder %v215, 15
    %v224 = vrot.slane %v49, 7
    %v225 = vrot.slane %v50, 7
    %v226 = vrot.slane %v81, 7
    %v227 = vrot.slane %v82, 7
    %vm228 = vcmp.lt.s32.totalorder %v164, 1
    %v229 = vsel %vm228, %v226, %v227
    %v230 = vsel %vm228, %v225, %v226
    %v231 = vsel %vm228, %v224, %v225
    %v232 = vsel %vm228, %v227, %v224
    %v233 = vsel %vm216, 1, 0
    %v234 = vsel %vm217, 1, 0
    %v235 = vsel %vm218, 1, 0
    %v236 = vsel %vm219, 1, 0
    %vm237 = vcmp.eq.s32.totalorder %v233, 1
    %vm238 = vcmp.eq.s32.totalorder %v234, 1
    %vm239 = vcmp.eq.s32.totalorder %v235, 1
    %vm240 = vcmp.eq.s32.totalorder %v236, 1
    %v241 = vsel %vm237, 0.0, %v232
    %v242 = vsel %vm238, 0.0, %v231
    %v243 = vsel %vm239, 0.0, %v230
    %v244 = vsel %vm240, 0.0, %v229
    %v245 = vrot.slane %v49, 1
    %v246 = vrot.slane %v50, 1
    %v247 = vrot.slane %v81, 1
    %v248 = vrot.slane %v82, 1
    %vm249 = vcmp.lt.s32.totalorder %v164, 7
    %v250 = vsel %vm249, %v247, %v248
    %v251 = vsel %vm249, %v246, %v247
    %v252 = vsel %vm249, %v245, %v246
    %v253 = vsel %vm249, %v248, %v245
    %v254 = vsel %vm220, 1, 0
    %v255 = vsel %vm221, 1, 0
    %v256 = vsel %vm222, 1, 0
    %v257 = vsel %vm223, 1, 0
    %vm258 = vcmp.eq.s32.totalorder %v254, 1
    %vm259 = vcmp.eq.s32.totalorder %v255, 1
    %vm260 = vcmp.eq.s32.totalorder %v256, 1
    %vm261 = vcmp.eq.s32.totalorder %v257, 1
    %v262 = vsel %vm258, 0.0, %v252
    %v263 = vsel %vm259, 0.0, %v251
    %v264 = vsel %vm260, 0.0, %v250
    %v265 = vsel %vm261, 0.0, %v253
    %270 = vrot.lane.b32.xlu0 %v49, 4
    %v271 = vpop.permute.xlu0 %270
    %272 = vrot.lane.b32.xlu0 %v50, 4
    %v273 = vpop.permute.xlu0 %272
    %274 = vrot.lane.b32.xlu0 %v81, 4
    %v275 = vpop.permute.xlu0 %274
    %276 = vrot.lane.b32.xlu0 %v82, 4
    %v277 = vpop.permute.xlu0 %276
    %286 = vrot.lane.b32.xlu0 %v262, 8
    %v287 = vpop.permute.xlu0 %286
    %288 = vrot.lane.b32.xlu0 %v263, 8
    %v289 = vpop.permute.xlu0 %288
    %290 = vrot.lane.b32.xlu0 %v264, 8
    %v291 = vpop.permute.xlu0 %290
    %292 = vrot.lane.b32.xlu0 %v265, 8
    %v293 = vpop.permute.xlu0 %292
    %vm298 = vcmask 31744
    %v299 = vsel %vm298, %v241, %v271
    %v300 = vsel %vm298, %v242, %v273
    %v301 = vsel %vm298, %v243, %v275
    %v302 = vsel %vm298, %v244, %v277
    %vm303 = vcmask 64512
    %v304 = vsel %vm303, %v299, %v287
    %v305 = vsel %vm303, %v300, %v289
    %v306 = vsel %vm303, %v301, %v291
    %v307 = vsel %vm303, %v302, %v293
    %v308 = vlaneseq
    %v309 = vshrl.u32 %v308, 7
    %v310 = vsub.s32 0, %v309
    %v311 = vrot.slane %v28, %v310
    %vm312 = vcmask 97280
    %v314 = vsel %vm312, %v304, 0
    %v317 = vsel %vm312, %v305, 0
    %v320 = vsel %vm312, %v306, 0
    %v323 = vsel %vm312, %v307, 0
    %vm325 = vcmask 1043456
    %v327 = vsel %vm325, %v22, 0
    %329 = vmatprep.subr.mxu0 0.0
    %330 = vmatpush1.msra.mxu0 %v21
    %331 = vmatprep.subr.mxu0 0.0
    %332 = vmatpush1.msra.mxu0 %v327
    %333 = vmatprep.subr.mxu0 0.0
    %334 = vmatpush1.msra.mxu0 0.0
    %335 = vmatprep.subr.mxu0 0.0
    %336 = vmatpush1.msra.mxu0 0.0
    %337 = vmatprep.subr.mxu0 0.0
    %338 = vmatpush1.msra.mxu0 0.0
    %339 = vmatprep.subr.mxu0 0.0
    %340 = vmatpush1.msra.mxu0 0.0
    %341 = vmatprep.subr.mxu0 0.0
    %342 = vmatpush1.msra.mxu0 0.0
    %343 = vmatprep.subr.mxu0 0.0
    %344 = vmatpush1.msra.mxu0 0.0
    %345 = vmatprep.subr.mxu0 0.0
    %346 = vmatpush1.msra.mxu0 0.0
    %347 = vmatprep.subr.mxu0 0.0
    %348 = vmatpush1.msra.mxu0 0.0
    %349 = vmatprep.subr.mxu0 0.0
    %350 = vmatpush1.msra.mxu0 0.0
    %351 = vmatprep.subr.mxu0 0.0
    %352 = vmatpush1.msra.mxu0 0.0
    %353 = vmatprep.subr.mxu0 0.0
    %354 = vmatpush1.msra.mxu0 0.0
    %355 = vmatprep.subr.mxu0 0.0
    %356 = vmatpush1.msra.mxu0 0.0
    %357 = vmatprep.subr.mxu0 0.0
    %358 = vmatpush1.msra.mxu0 0.0
    %359 = vmatprep.subr.mxu0 0.0
    %360 = vmatpush1.msra.mxu0 0.0
    %361 = vmatprep.subr.mxu0 0.0
    %362 = vmatpush1.msra.mxu0 0.0
    %363 = vmatprep.subr.mxu0 0.0
    %364 = vmatpush1.msra.mxu0 0.0
    %365 = vmatprep.subr.mxu0 0.0
    %366 = vmatpush1.msra.mxu0 0.0
    %367 = vmatprep.subr.mxu0 0.0
    %368 = vmatpush1.msra.mxu0 0.0
    %369 = vmatprep.subr.mxu0 0.0
    %370 = vmatpush1.msra.mxu0 0.0
    %371 = vmatprep.subr.mxu0 0.0
    %372 = vmatpush1.msra.mxu0 0.0
    %373 = vmatprep.subr.mxu0 0.0
    %374 = vmatpush1.msra.mxu0 0.0
    %375 = vmatprep.subr.mxu0 0.0
    %376 = vmatpush1.msra.mxu0 0.0
    %377 = vmatprep.subr.mxu0 0.0
    %378 = vmatpush1.msra.mxu0 0.0
    %379 = vmatprep.subr.mxu0 0.0
    %380 = vmatpush1.msra.mxu0 0.0
    %381 = vmatprep.subr.mxu0 0.0
    %382 = vmatpush1.msra.mxu0 0.0
    %383 = vmatprep.subr.mxu0 0.0
    %384 = vmatpush1.msra.mxu0 0.0
    %385 = vmatprep.subr.mxu0 0.0
    %386 = vmatpush1.msra.mxu0 0.0
    %387 = vmatprep.subr.mxu0 0.0
    %388 = vmatpush1.msra.mxu0 0.0
    %389 = vmatprep.subr.mxu0 0.0
    %390 = vmatpush1.msra.mxu0 0.0
    %391 = vmatprep.subr.mxu0 0.0
    %392 = vmatpush1.msra.mxu0 0.0
    %393 = vmatprep.mubr.f32.mxu0 0.0
    %394 = vmatmul.mubr.f32.gmra.mrb[0].mxu0 %v314
    %v395 = vpop.f32.mrb[0].mxu0
    %v396 = vadd.f32 %v311, %v395
    %v397 = vpop.f32.mrb[0].mxu0
    %398 = vmatprep.mubr.f32.mxu0 0.0
    %399 = vmatmul.mubr.f32.gmra.mrb[0].mxu0 %v317
    %v400 = vpop.f32.mrb[0].mxu0
    %v401 = vadd.f32 %v311, %v400
    %v402 = vpop.f32.mrb[0].mxu0
    %403 = vmatprep.mubr.f32.mxu0 0.0
    %404 = vmatmul.mubr.f32.gmra.mrb[0].mxu0 %v320
    %v405 = vpop.f32.mrb[0].mxu0
    %v406 = vadd.f32 %v311, %v405
    %v407 = vpop.f32.mrb[0].mxu0
    %408 = vmatprep.mubr.f32.mxu0 0.0
    %409 = vmatmul.mubr.f32.gmra.mrb[0].mxu0 %v323
    %v410 = vpop.f32.mrb[0].mxu0
    %v411 = vadd.f32 %v311, %v410
    %v412 = vpop.f32.mrb[0].mxu0
    %413 = vdwg.mxu0
    %v414 = vmax.f32 %v396, 0.0
    %v415 = vmax.f32 %v401, 0.0
    %v416 = vmax.f32 %v406, 0.0
    %v417 = vmax.f32 %v411, 0.0
    %v418 = vrot.slane %v414, 7
    %v419 = vrot.slane %v415, 7
    %v420 = vrot.slane %v416, 7
    %v421 = vrot.slane %v417, 7
    %v422 = vsel %vm228, %v420, %v421
    %v423 = vsel %vm228, %v419, %v420
    %v424 = vsel %vm228, %v418, %v419
    %v425 = vsel %vm228, %v421, %v418
    %v426 = vsel %vm237, 0.0, %v425
    %v427 = vsel %vm238, 0.0, %v424
    %v428 = vsel %vm239, 0.0, %v423
    %v429 = vsel %vm240, 0.0, %v422
    %v430 = vrot.slane %v414, 1
    %v431 = vrot.slane %v415, 1
    %v432 = vrot.slane %v416, 1
    %v433 = vrot.slane %v417, 1
    %v434 = vsel %vm249, %v432, %v433
    %v435 = vsel %vm249, %v431, %v432
    %v436 = vsel %vm249, %v430, %v431
    %v437 = vsel %vm249, %v433, %v430
    %v438 = vsel %vm258, 0.0, %v436
    %v439 = vsel %vm259, 0.0, %v435
    %v440 = vsel %vm260, 0.0, %v434
    %v441 = vsel %vm261, 0.0, %v437
    %446 = vrot.lane.b32.xlu0 %v414, 4
    %v447 = vpop.permute.xlu0 %446
    %448 = vrot.lane.b32.xlu0 %v415, 4
    %v449 = vpop.permute.xlu0 %448
    %450 = vrot.lane.b32.xlu0 %v416, 4
    %v451 = vpop.permute.xlu0 %450
    %452 = vrot.lane.b32.xlu0 %v417, 4
    %v453 = vpop.permute.xlu0 %452
    %462 = vrot.lane.b32.xlu0 %v438, 8
    %v463 = vpop.permute.xlu0 %462
    %464 = vrot.lane.b32.xlu0 %v439, 8
    %v465 = vpop.permute.xlu0 %464
    %466 = vrot.lane.b32.xlu0 %v440, 8
    %v467 = vpop.permute.xlu0 %466
    %468 = vrot.lane.b32.xlu0 %v441, 8
    %v469 = vpop.permute.xlu0 %468
    %v474 = vsel %vm298, %v426, %v447
    %v475 = vsel %vm298, %v427, %v449
    %v476 = vsel %vm298, %v428, %v451
    %v477 = vsel %vm298, %v429, %v453
    %v478 = vsel %vm303, %v474, %v463
    %v479 = vsel %vm303, %v475, %v465
    %v480 = vsel %vm303, %v476, %v467
    %v481 = vsel %vm303, %v477, %v469
    %v482 = vlaneseq
    %v483 = vshrl.u32 %v482, 7
    %v484 = vsub.s32 1, %v483
    %v485 = vrot.slane %v28, %v484
    %v487 = vrot.slane %v22, 4
    %v488 = vrot.slane %v23, 4
    %v489 = vsel %vm325, %v487, %v488
    %v492 = vsel %vm312, %v478, 0
    %v495 = vsel %vm312, %v479, 0
    %v498 = vsel %vm312, %v480, 0
    %v501 = vsel %vm312, %v481, 0
    %v503 = vsel %vm325, %v488, 0
    %505 = vmatprep.subr.mxu0 0.0
    %506 = vmatpush1.msra.mxu0 %v489
    %507 = vmatprep.subr.mxu0 0.0
    %508 = vmatpush1.msra.mxu0 %v503
    %509 = vmatprep.subr.mxu0 0.0
    %510 = vmatpush1.msra.mxu0 0.0
    %511 = vmatprep.subr.mxu0 0.0
    %512 = vmatpush1.msra.mxu0 0.0
    %513 = vmatprep.subr.mxu0 0.0
    %514 = vmatpush1.msra.mxu0 0.0
    %515 = vmatprep.subr.mxu0 0.0
    %516 = vmatpush1.msra.mxu0 0.0
    %517 = vmatprep.subr.mxu0 0.0
    %518 = vmatpush1.msra.mxu0 0.0
    %519 = vmatprep.subr.mxu0 0.0
    %520 = vmatpush1.msra.mxu0 0.0
    %521 = vmatprep.subr.mxu0 0.0
    %522 = vmatpush1.msra.mxu0 0.0
    %523 = vmatprep.subr.mxu0 0.0
    %524 = vmatpush1.msra.mxu0 0.0
    %525 = vmatprep.subr.mxu0 0.0
    %526 = vmatpush1.msra.mxu0 0.0
    %527 = vmatprep.subr.mxu0 0.0
    %528 = vmatpush1.msra.mxu0 0.0
    %529 = vmatprep.subr.mxu0 0.0
    %530 = vmatpush1.msra.mxu0 0.0
    %531 = vmatprep.subr.mxu0 0.0
    %532 = vmatpush1.msra.mxu0 0.0
    %533 = vmatprep.subr.mxu0 0.0
    %534 = vmatpush1.msra.mxu0 0.0
    %535 = vmatprep.subr.mxu0 0.0
    %536 = vmatpush1.msra.mxu0 0.0
    %537 = vmatprep.subr.mxu0 0.0
    %538 = vmatpush1.msra.mxu0 0.0
    %539 = vmatprep.subr.mxu0 0.0
    %540 = vmatpush1.msra.mxu0 0.0
    %541 = vmatprep.subr.mxu0 0.0
    %542 = vmatpush1.msra.mxu0 0.0
    %543 = vmatprep.subr.mxu0 0.0
    %544 = vmatpush1.msra.mxu0 0.0
    %545 = vmatprep.subr.mxu0 0.0
    %546 = vmatpush1.msra.mxu0 0.0
    %547 = vmatprep.subr.mxu0 0.0
    %548 = vmatpush1.msra.mxu0 0.0
    %549 = vmatprep.subr.mxu0 0.0
    %550 = vmatpush1.msra.mxu0 0.0
    %551 = vmatprep.subr.mxu0 0.0
    %552 = vmatpush1.msra.mxu0 0.0
    %553 = vmatprep.subr.mxu0 0.0
    %554 = vmatpush1.msra.mxu0 0.0
    %555 = vmatprep.subr.mxu0 0.0
    %556 = vmatpush1.msra.mxu0 0.0
    %557 = vmatprep.subr.mxu0 0.0
    %558 = vmatpush1.msra.mxu0 0.0
    %559 = vmatprep.subr.mxu0 0.0
    %560 = vmatpush1.msra.mxu0 0.0
    %561 = vmatprep.subr.mxu0 0.0
    %562 = vmatpush1.msra.mxu0 0.0
    %563 = vmatprep.subr.mxu0 0.0
    %564 = vmatpush1.msra.mxu0 0.0
    %565 = vmatprep.subr.mxu0 0.0
    %566 = vmatpush1.msra.mxu0 0.0
    %567 = vmatprep.subr.mxu0 0.0
    %568 = vmatpush1.msra.mxu0 0.0
    %569 = vmatprep.mubr.f32.mxu0 0.0
    %570 = vmatmul.mubr.f32.gmra.mrb[0].mxu0 %v492
    %v571 = vpop.f32.mrb[0].mxu0
    %v572 = vadd.f32 %v485, %v571
    %v573 = vpop.f32.mrb[0].mxu0
    %574 = vmatprep.mubr.f32.mxu0 0.0
    %575 = vmatmul.mubr.f32.gmra.mrb[0].mxu0 %v495
    %v576 = vpop.f32.mrb[0].mxu0
    %v577 = vadd.f32 %v485, %v576
    %v578 = vpop.f32.mrb[0].mxu0
    %579 = vmatprep.mubr.f32.mxu0 0.0
    %580 = vmatmul.mubr.f32.gmra.mrb[0].mxu0 %v498
    %v581 = vpop.f32.mrb[0].mxu0
    %v582 = vadd.f32 %v485, %v581
    %v583 = vpop.f32.mrb[0].mxu0
    %584 = vmatprep.mubr.f32.mxu0 0.0
    %585 = vmatmul.mubr.f32.gmra.mrb[0].mxu0 %v501
    %v586 = vpop.f32.mrb[0].mxu0
    %v587 = vadd.f32 %v485, %v586
    %v588 = vpop.f32.mrb[0].mxu0
    %589 = vdwg.mxu0
    %v590 = vlaneseq
    %v591 = vshrl.u32 %v590, 7
    %v592 = vsub.s32 4, %v591
    %v593 = vrot.slane %v29, %v592
    %v595 = vsel %vm298, %v572, 0
    %v598 = vsel %vm298, %v577, 0
    %v601 = vsel %vm298, %v582, 0
    %v604 = vsel %vm298, %v587, 0
    %v607 = vsel %vm325, %v29, 0
    %609 = vmatprep.subr.mxu0 0.0
    %610 = vmatpush1.msra.mxu0 %v607
    %611 = vmatprep.subr.mxu0 0.0
    %612 = vmatpush1.msra.mxu0 0.0
    %613 = vmatprep.subr.mxu0 0.0
    %614 = vmatpush1.msra.mxu0 0.0
    %615 = vmatprep.subr.mxu0 0.0
    %616 = vmatpush1.msra.mxu0 0.0
    %617 = vmatprep.subr.mxu0 0.0
    %618 = vmatpush1.msra.mxu0 0.0
    %619 = vmatprep.subr.mxu0 0.0
    %620 = vmatpush1.msra.mxu0 0.0
    %621 = vmatprep.subr.mxu0 0.0
    %622 = vmatpush1.msra.mxu0 0.0
    %623 = vmatprep.subr.mxu0 0.0
    %624 = vmatpush1.msra.mxu0 0.0
    %625 = vmatprep.subr.mxu0 0.0
    %626 = vmatpush1.msra.mxu0 0.0
    %627 = vmatprep.subr.mxu0 0.0
    %628 = vmatpush1.msra.mxu0 0.0
    %629 = vmatprep.subr.mxu0 0.0
    %630 = vmatpush1.msra.mxu0 0.0
    %631 = vmatprep.subr.mxu0 0.0
    %632 = vmatpush1.msra.mxu0 0.0
    %633 = vmatprep.subr.mxu0 0.0
    %634 = vmatpush1.msra.mxu0 0.0
    %635 = vmatprep.subr.mxu0 0.0
    %636 = vmatpush1.msra.mxu0 0.0
    %637 = vmatprep.subr.mxu0 0.0
    %638 = vmatpush1.msra.mxu0 0.0
    %639 = vmatprep.subr.mxu0 0.0
    %640 = vmatpush1.msra.mxu0 0.0
    %641 = vmatprep.subr.mxu0 0.0
    %642 = vmatpush1.msra.mxu0 0.0
    %643 = vmatprep.subr.mxu0 0.0
    %644 = vmatpush1.msra.mxu0 0.0
    %645 = vmatprep.subr.mxu0 0.0
    %646 = vmatpush1.msra.mxu0 0.0
    %647 = vmatprep.subr.mxu0 0.0
    %648 = vmatpush1.msra.mxu0 0.0
    %649 = vmatprep.subr.mxu0 0.0
    %650 = vmatpush1.msra.mxu0 0.0
    %651 = vmatprep.subr.mxu0 0.0
    %652 = vmatpush1.msra.mxu0 0.0
    %653 = vmatprep.subr.mxu0 0.0
    %654 = vmatpush1.msra.mxu0 0.0
    %655 = vmatprep.subr.mxu0 0.0
    %656 = vmatpush1.msra.mxu0 0.0
    %657 = vmatprep.subr.mxu0 0.0
    %658 = vmatpush1.msra.mxu0 0.0
    %659 = vmatprep.subr.mxu0 0.0
    %660 = vmatpush1.msra.mxu0 0.0
    %661 = vmatprep.subr.mxu0 0.0
    %662 = vmatpush1.msra.mxu0 0.0
    %663 = vmatprep.subr.mxu0 0.0
    %664 = vmatpush1.msra.mxu0 0.0
    %665 = vmatprep.subr.mxu0 0.0
    %666 = vmatpush1.msra.mxu0 0.0
    %667 = vmatprep.subr.mxu0 0.0
    %668 = vmatpush1.msra.mxu0 0.0
    %669 = vmatprep.subr.mxu0 0.0
    %670 = vmatpush1.msra.mxu0 0.0
    %671 = vmatprep.subr.mxu0 0.0
    %672 = vmatpush1.msra.mxu0 0.0
    %673 = vmatprep.mubr.f32.mxu0 0.0
    %674 = vmatmul.mubr.f32.gmra.mrb[0].mxu0 %v595
    %v675 = vpop.f32.mrb[0].mxu0
    %v676 = vadd.f32 %v593, %v675
    %v677 = vpop.f32.mrb[0].mxu0
    %678 = vmatprep.mubr.f32.mxu0 0.0
    %679 = vmatmul.mubr.f32.gmra.mrb[0].mxu0 %v598
    %v680 = vpop.f32.mrb[0].mxu0
    %v681 = vadd.f32 %v593, %v680
    %v682 = vpop.f32.mrb[0].mxu0
    %683 = vmatprep.mubr.f32.mxu0 0.0
    %684 = vmatmul.mubr.f32.gmra.mrb[0].mxu0 %v601
    %v685 = vpop.f32.mrb[0].mxu0
    %v686 = vadd.f32 %v593, %v685
    %v687 = vpop.f32.mrb[0].mxu0
    %688 = vmatprep.mubr.f32.mxu0 0.0
    %689 = vmatmul.mubr.f32.gmra.mrb[0].mxu0 %v604
    %v690 = vpop.f32.mrb[0].mxu0
    %v691 = vadd.f32 %v593, %v690
    %v692 = vpop.f32.mrb[0].mxu0
    %693 = vdwg.mxu0
    %v694 = vlaneseq
    %v695 = vshrl.u32 %v694, 7
    %v696 = vsub.s32 6, %v695
    %v697 = vrot.slane %v30, %v696
    %vm698 = vcmask 48128
    %v700 = vsel %vm698, %v115, 0
    %v703 = vsel %vm698, %v147, 0
    %vm705 = vcmask 1045504
    %v707 = vsel %vm705, %v30, 0
    %709 = vmatprep.subr.mxu0 0.0
    %710 = vmatpush1.msra.mxu0 %v707
    %711 = vmatprep.subr.mxu0 0.0
    %712 = vmatpush1.msra.mxu0 0.0
    %713 = vmatprep.subr.mxu0 0.0
    %714 = vmatpush1.msra.mxu0 0.0
    %715 = vmatprep.subr.mxu0 0.0
    %716 = vmatpush1.msra.mxu0 0.0
    %717 = vmatprep.subr.mxu0 0.0
    %718 = vmatpush1.msra.mxu0 0.0
    %719 = vmatprep.subr.mxu0 0.0
    %720 = vmatpush1.msra.mxu0 0.0
    %721 = vmatprep.subr.mxu0 0.0
    %722 = vmatpush1.msra.mxu0 0.0
    %723 = vmatprep.subr.mxu0 0.0
    %724 = vmatpush1.msra.mxu0 0.0
    %725 = vmatprep.subr.mxu0 0.0
    %726 = vmatpush1.msra.mxu0 0.0
    %727 = vmatprep.subr.mxu0 0.0
    %728 = vmatpush1.msra.mxu0 0.0
    %729 = vmatprep.subr.mxu0 0.0
    %730 = vmatpush1.msra.mxu0 0.0
    %731 = vmatprep.subr.mxu0 0.0
    %732 = vmatpush1.msra.mxu0 0.0
    %733 = vmatprep.subr.mxu0 0.0
    %734 = vmatpush1.msra.mxu0 0.0
    %735 = vmatprep.subr.mxu0 0.0
    %736 = vmatpush1.msra.mxu0 0.0
    %737 = vmatprep.subr.mxu0 0.0
    %738 = vmatpush1.msra.mxu0 0.0
    %739 = vmatprep.subr.mxu0 0.0
    %740 = vmatpush1.msra.mxu0 0.0
    %741 = vmatprep.subr.mxu0 0.0
    %742 = vmatpush1.msra.mxu0 0.0
    %743 = vmatprep.subr.mxu0 0.0
    %744 = vmatpush1.msra.mxu0 0.0
    %745 = vmatprep.subr.mxu0 0.0
    %746 = vmatpush1.msra.mxu0 0.0
    %747 = vmatprep.subr.mxu0 0.0
    %748 = vmatpush1.msra.mxu0 0.0
    %749 = vmatprep.subr.mxu0 0.0
    %750 = vmatpush1.msra.mxu0 0.0
    %751 = vmatprep.subr.mxu0 0.0
    %752 = vmatpush1.msra.mxu0 0.0
    %753 = vmatprep.subr.mxu0 0.0
    %754 = vmatpush1.msra.mxu0 0.0
    %755 = vmatprep.subr.mxu0 0.0
    %756 = vmatpush1.msra.mxu0 0.0
    %757 = vmatprep.subr.mxu0 0.0
    %758 = vmatpush1.msra.mxu0 0.0
    %759 = vmatprep.subr.mxu0 0.0
    %760 = vmatpush1.msra.mxu0 0.0
    %761 = vmatprep.subr.mxu0 0.0
    %762 = vmatpush1.msra.mxu0 0.0
    %763 = vmatprep.subr.mxu0 0.0
    %764 = vmatpush1.msra.mxu0 0.0
    %765 = vmatprep.subr.mxu0 0.0
    %766 = vmatpush1.msra.mxu0 0.0
    %767 = vmatprep.subr.mxu0 0.0
    %768 = vmatpush1.msra.mxu0 0.0
    %769 = vmatprep.subr.mxu0 0.0
    %770 = vmatpush1.msra.mxu0 0.0
    %771 = vmatprep.subr.mxu0 0.0
    %772 = vmatpush1.msra.mxu0 0.0
    %773 = vmatprep.mubr.f32.mxu0 0.0
    %774 = vmatmul.mubr.f32.gmra.mrb[0].mxu0 %v700
    %v775 = vpop.f32.mrb[0].mxu0
    %v776 = vadd.f32 %v697, %v775
    %v777 = vpop.f32.mrb[0].mxu0
    %778 = vmatprep.mubr.f32.mxu0 0.0
    %779 = vmatmul.mubr.f32.gmra.mrb[0].mxu0 %v703
    %v780 = vpop.f32.mrb[0].mxu0
    %v781 = vadd.f32 %v697, %v780
    %v782 = vpop.f32.mrb[0].mxu0
    %783 = vdwg.mxu0
    %vm784 = vcmask 261120
    %v786 = vsel %vm784, %v676, 0
    %v789 = vsel %vm784, %v681, 0
    %v792 = vsel %vm784, %v776, 0
    %794 = vmatprep.subr.mxu0 0.0
    %795 = vmatpush1.xpose.msra.mxu0 %v792
    %796 = vmatprep.subr.mxu0 0.0
    %797 = vmatpush1.xpose.msra.mxu0 0.0
    %798 = vmatprep.subr.mxu0 0.0
    %799 = vmatpush1.xpose.msra.mxu0 0.0
    %800 = vmatprep.subr.mxu0 0.0
    %801 = vmatpush1.xpose.msra.mxu0 0.0
    %802 = vmatprep.subr.mxu0 0.0
    %803 = vmatpush1.xpose.msra.mxu0 0.0
    %804 = vmatprep.subr.mxu0 0.0
    %805 = vmatpush1.xpose.msra.mxu0 0.0
    %806 = vmatprep.subr.mxu0 0.0
    %807 = vmatpush1.xpose.msra.mxu0 0.0
    %808 = vmatprep.subr.mxu0 0.0
    %809 = vmatpush1.xpose.msra.mxu0 0.0
    %810 = vmatprep.subr.mxu0 0.0
    %811 = vmatpush1.xpose.msra.mxu0 0.0
    %812 = vmatprep.subr.mxu0 0.0
    %813 = vmatpush1.xpose.msra.mxu0 0.0
    %814 = vmatprep.subr.mxu0 0.0
    %815 = vmatpush1.xpose.msra.mxu0 0.0
    %816 = vmatprep.subr.mxu0 0.0
    %817 = vmatpush1.xpose.msra.mxu0 0.0
    %818 = vmatprep.subr.mxu0 0.0
    %819 = vmatpush1.xpose.msra.mxu0 0.0
    %820 = vmatprep.subr.mxu0 0.0
    %821 = vmatpush1.xpose.msra.mxu0 0.0
    %822 = vmatprep.subr.mxu0 0.0
    %823 = vmatpush1.xpose.msra.mxu0 0.0
    %824 = vmatprep.subr.mxu0 0.0
    %825 = vmatpush1.xpose.msra.mxu0 0.0
    %826 = vmatprep.subr.mxu0 0.0
    %827 = vmatpush1.xpose.msra.mxu0 0.0
    %828 = vmatprep.subr.mxu0 0.0
    %829 = vmatpush1.xpose.msra.mxu0 0.0
    %830 = vmatprep.subr.mxu0 0.0
    %831 = vmatpush1.xpose.msra.mxu0 0.0
    %832 = vmatprep.subr.mxu0 0.0
    %833 = vmatpush1.xpose.msra.mxu0 0.0
    %834 = vmatprep.subr.mxu0 0.0
    %835 = vmatpush1.xpose.msra.mxu0 0.0
    %836 = vmatprep.subr.mxu0 0.0
    %837 = vmatpush1.xpose.msra.mxu0 0.0
    %838 = vmatprep.subr.mxu0 0.0
    %839 = vmatpush1.xpose.msra.mxu0 0.0
    %840 = vmatprep.subr.mxu0 0.0
    %841 = vmatpush1.xpose.msra.mxu0 0.0
    %842 = vmatprep.subr.mxu0 0.0
    %843 = vmatpush1.xpose.msra.mxu0 0.0
    %844 = vmatprep.subr.mxu0 0.0
    %845 = vmatpush1.xpose.msra.mxu0 0.0
    %846 = vmatprep.subr.mxu0 0.0
    %847 = vmatpush1.xpose.msra.mxu0 0.0
    %848 = vmatprep.subr.mxu0 0.0
    %849 = vmatpush1.xpose.msra.mxu0 0.0
    %850 = vmatprep.subr.mxu0 0.0
    %851 = vmatpush1.xpose.msra.mxu0 0.0
    %852 = vmatprep.subr.mxu0 0.0
    %853 = vmatpush1.xpose.msra.mxu0 0.0
    %854 = vmatprep.subr.mxu0 0.0
    %855 = vmatpush1.xpose.msra.mxu0 0.0
    %856 = vmatprep.subr.mxu0 0.0
    %857 = vmatpush1.xpose.msra.mxu0 0.0
    %858 = vmatprep.mubr.f32.mxu0 0.0
    %859 = vmatmul.mubr.f32.gmra.mrb[0].mxu0 %v786
    %v860 = vpop.f32.mrb[0].mxu0
    %v861 = vadd.f32 0.0, %v860
    %v862 = vpop.f32.mrb[0].mxu0
    %863 = vmatprep.mubr.f32.mxu0 0.0
    %864 = vmatmul.mubr.f32.gmra.mrb[0].mxu0 %v789
    %v865 = vpop.f32.mrb[0].mxu0
    %v866 = vadd.f32 0.0, %v865
    %v867 = vpop.f32.mrb[0].mxu0
    %868 = vdwg.mxu0
    %v870 = vsel %vm784, %v686, 0
    %v873 = vsel %vm784, %v691, 0
    %v876 = vsel %vm784, %v781, 0
    %878 = vmatprep.subr.mxu0 0.0
    %879 = vmatpush1.xpose.msra.mxu0 %v876
    %880 = vmatprep.subr.mxu0 0.0
    %881 = vmatpush1.xpose.msra.mxu0 0.0
    %882 = vmatprep.subr.mxu0 0.0
    %883 = vmatpush1.xpose.msra.mxu0 0.0
    %884 = vmatprep.subr.mxu0 0.0
    %885 = vmatpush1.xpose.msra.mxu0 0.0
    %886 = vmatprep.subr.mxu0 0.0
    %887 = vmatpush1.xpose.msra.mxu0 0.0
    %888 = vmatprep.subr.mxu0 0.0
    %889 = vmatpush1.xpose.msra.mxu0 0.0
    %890 = vmatprep.subr.mxu0 0.0
    %891 = vmatpush1.xpose.msra.mxu0 0.0
    %892 = vmatprep.subr.mxu0 0.0
    %893 = vmatpush1.xpose.msra.mxu0 0.0
    %894 = vmatprep.subr.mxu0 0.0
    %895 = vmatpush1.xpose.msra.mxu0 0.0
    %896 = vmatprep.subr.mxu0 0.0
    %897 = vmatpush1.xpose.msra.mxu0 0.0
    %898 = vmatprep.subr.mxu0 0.0
    %899 = vmatpush1.xpose.msra.mxu0 0.0
    %900 = vmatprep.subr.mxu0 0.0
    %901 = vmatpush1.xpose.msra.mxu0 0.0
    %902 = vmatprep.subr.mxu0 0.0
    %903 = vmatpush1.xpose.msra.mxu0 0.0
    %904 = vmatprep.subr.mxu0 0.0
    %905 = vmatpush1.xpose.msra.mxu0 0.0
    %906 = vmatprep.subr.mxu0 0.0
    %907 = vmatpush1.xpose.msra.mxu0 0.0
    %908 = vmatprep.subr.mxu0 0.0
    %909 = vmatpush1.xpose.msra.mxu0 0.0
    %910 = vmatprep.subr.mxu0 0.0
    %911 = vmatpush1.xpose.msra.mxu0 0.0
    %912 = vmatprep.subr.mxu0 0.0
    %913 = vmatpush1.xpose.msra.mxu0 0.0
    %914 = vmatprep.subr.mxu0 0.0
    %915 = vmatpush1.xpose.msra.mxu0 0.0
    %916 = vmatprep.subr.mxu0 0.0
    %917 = vmatpush1.xpose.msra.mxu0 0.0
    %918 = vmatprep.subr.mxu0 0.0
    %919 = vmatpush1.xpose.msra.mxu0 0.0
    %920 = vmatprep.subr.mxu0 0.0
    %921 = vmatpush1.xpose.msra.mxu0 0.0
    %922 = vmatprep.subr.mxu0 0.0
    %923 = vmatpush1.xpose.msra.mxu0 0.0
    %924 = vmatprep.subr.mxu0 0.0
    %925 = vmatpush1.xpose.msra.mxu0 0.0
    %926 = vmatprep.subr.mxu0 0.0
    %927 = vmatpush1.xpose.msra.mxu0 0.0
    %928 = vmatprep.subr.mxu0 0.0
    %929 = vmatpush1.xpose.msra.mxu0 0.0
    %930 = vmatprep.subr.mxu0 0.0
    %931 = vmatpush1.xpose.msra.mxu0 0.0
    %932 = vmatprep.subr.mxu0 0.0
    %933 = vmatpush1.xpose.msra.mxu0 0.0
    %934 = vmatprep.subr.mxu0 0.0
    %935 = vmatpush1.xpose.msra.mxu0 0.0
    %936 = vmatprep.subr.mxu0 0.0
    %937 = vmatpush1.xpose.msra.mxu0 0.0
    %938 = vmatprep.subr.mxu0 0.0
    %939 = vmatpush1.xpose.msra.mxu0 0.0
    %940 = vmatprep.subr.mxu0 0.0
    %941 = vmatpush1.xpose.msra.mxu0 0.0
    %942 = vmatprep.mubr.f32.mxu0 0.0
    %943 = vmatmul.mubr.f32.gmra.mrb[0].mxu0 %v870
    %v944 = vpop.f32.mrb[0].mxu0
    %v945 = vadd.f32 0.0, %v944
    %v946 = vpop.f32.mrb[0].mxu0
    %947 = vmatprep.mubr.f32.mxu0 0.0
    %948 = vmatmul.mubr.f32.gmra.mrb[0].mxu0 %v873
    %v949 = vpop.f32.mrb[0].mxu0
    %v950 = vadd.f32 0.0, %v949
    %v951 = vpop.f32.mrb[0].mxu0
    %952 = vdwg.mxu0
    %v953 = vsel %vm303, %v861, -inf
    %954 = vmax.xlane.f32.xlu0 %v953
    %v955 = vpop.xlane.xlu0 %954
    %v956 = vsel %vm303, %v866, -inf
    %957 = vmax.xlane.f32.xlu0 %v956
    %v958 = vpop.xlane.xlu0 %957
    %v959 = vsel %vm303, %v945, -inf
    %960 = vmax.xlane.f32.xlu0 %v959
    %v961 = vpop.xlane.xlu0 %960
    %v962 = vsel %vm303, %v950, -inf
    %963 = vmax.xlane.f32.xlu0 %v962
    %v964 = vpop.xlane.xlu0 %963
    %v965 = vsub.f32 %v861, %v955
    %v966 = vsub.f32 %v866, %v958
    %v967 = vsub.f32 %v945, %v961
    %v968 = vsub.f32 %v950, %v964
    %v969 = vmul.f32 %v965, 1.442695
    %v970 = vpow.pop %v969
    %v971 = vmul.f32 %v966, 1.442695
    %v972 = vpow.pop %v971
    %v973 = vmul.f32 %v967, 1.442695
    %v974 = vpow.pop %v973
    %v975 = vmul.f32 %v968, 1.442695
    %v976 = vpow.pop %v975
    %v977 = vsel %vm303, %v970, 0.0
    %978 = vadd.xlane.f32.xlu0 %v977
    %v979 = vpop.xlane.xlu0 %978
    %v980 = vsel %vm303, %v972, 0.0
    %981 = vadd.xlane.f32.xlu0 %v980
    %v982 = vpop.xlane.xlu0 %981
    %v983 = vsel %vm303, %v974, 0.0
    %984 = vadd.xlane.f32.xlu0 %v983
    %v985 = vpop.xlane.xlu0 %984
    %v986 = vsel %vm303, %v976, 0.0
    %987 = vadd.xlane.f32.xlu0 %v986
    %v988 = vpop.xlane.xlu0 %987
    %v989 = vrcp.pop %v979
    %v990 = vmul.f32 %v970, %v989
    %v991 = vrcp.pop %v982
    %v992 = vmul.f32 %v972, %v991
    %v993 = vrcp.pop %v985
    %v994 = vmul.f32 %v974, %v993
    %v995 = vrcp.pop %v988
    %v996 = vmul.f32 %v976, %v995
    %997 = vrot.lane.b32.xlu0 %v776, 96
    %v998 = vpop.permute.xlu0 %997
    %v1001 = vsel %vm303, %v990, 0
    %v1004 = vsel %vm303, %v992, 0
    %1006 = vmatprep.subr.mxu0 0.0
    %1007 = vmatpush1.msra.mxu0 %v998
    %1008 = vmatprep.subr.mxu0 0.0
    %1009 = vmatpush1.msra.mxu0 0.0
    %1010 = vmatprep.subr.mxu0 0.0
    %1011 = vmatpush1.msra.mxu0 0.0
    %1012 = vmatprep.subr.mxu0 0.0
    %1013 = vmatpush1.msra.mxu0 0.0
    %1014 = vmatprep.subr.mxu0 0.0
    %1015 = vmatpush1.msra.mxu0 0.0
    %1016 = vmatprep.subr.mxu0 0.0
    %1017 = vmatpush1.msra.mxu0 0.0
    %1018 = vmatprep.subr.mxu0 0.0
    %1019 = vmatpush1.msra.mxu0 0.0
    %1020 = vmatprep.subr.mxu0 0.0
    %1021 = vmatpush1.msra.mxu0 0.0
    %1022 = vmatprep.subr.mxu0 0.0
    %1023 = vmatpush1.msra.mxu0 0.0
    %1024 = vmatprep.subr.mxu0 0.0
    %1025 = vmatpush1.msra.mxu0 0.0
    %1026 = vmatprep.subr.mxu0 0.0
    %1027 = vmatpush1.msra.mxu0 0.0
    %1028 = vmatprep.subr.mxu0 0.0
    %1029 = vmatpush1.msra.mxu0 0.0
    %1030 = vmatprep.subr.mxu0 0.0
    %1031 = vmatpush1.msra.mxu0 0.0
    %1032 = vmatprep.subr.mxu0 0.0
    %1033 = vmatpush1.msra.mxu0 0.0
    %1034 = vmatprep.subr.mxu0 0.0
    %1035 = vmatpush1.msra.mxu0 0.0
    %1036 = vmatprep.subr.mxu0 0.0
    %1037 = vmatpush1.msra.mxu0 0.0
    %1038 = vmatprep.subr.mxu0 0.0
    %1039 = vmatpush1.msra.mxu0 0.0
    %1040 = vmatprep.subr.mxu0 0.0
    %1041 = vmatpush1.msra.mxu0 0.0
    %1042 = vmatprep.subr.mxu0 0.0
    %1043 = vmatpush1.msra.mxu0 0.0
    %1044 = vmatprep.subr.mxu0 0.0
    %1045 = vmatpush1.msra.mxu0 0.0
    %1046 = vmatprep.subr.mxu0 0.0
    %1047 = vmatpush1.msra.mxu0 0.0
    %1048 = vmatprep.subr.mxu0 0.0
    %1049 = vmatpush1.msra.mxu0 0.0
    %1050 = vmatprep.subr.mxu0 0.0
    %1051 = vmatpush1.msra.mxu0 0.0
    %1052 = vmatprep.subr.mxu0 0.0
    %1053 = vmatpush1.msra.mxu0 0.0
    %1054 = vmatprep.subr.mxu0 0.0
    %1055 = vmatpush1.msra.mxu0 0.0
    %1056 = vmatprep.subr.mxu0 0.0
    %1057 = vmatpush1.msra.mxu0 0.0
    %1058 = vmatprep.subr.mxu0 0.0
    %1059 = vmatpush1.msra.mxu0 0.0
    %1060 = vmatprep.subr.mxu0 0.0
    %1061 = vmatpush1.msra.mxu0 0.0
    %1062 = vmatprep.subr.mxu0 0.0
    %1063 = vmatpush1.msra.mxu0 0.0
    %1064 = vmatprep.subr.mxu0 0.0
    %1065 = vmatpush1.msra.mxu0 0.0
    %1066 = vmatprep.subr.mxu0 0.0
    %1067 = vmatpush1.msra.mxu0 0.0
    %1068 = vmatprep.subr.mxu0 0.0
    %1069 = vmatpush1.msra.mxu0 0.0
    %1070 = vmatprep.mubr.f32.mxu0 0.0
    %1071 = vmatmul.mubr.f32.gmra.mrb[0].mxu0 %v1001
    %v1072 = vpop.f32.mrb[0].mxu0
    %v1073 = vadd.f32 0.0, %v1072
    %v1074 = vpop.f32.mrb[0].mxu0
    %1075 = vmatprep.mubr.f32.mxu0 0.0
    %1076 = vmatmul.mubr.f32.gmra.mrb[0].mxu0 %v1004
    %v1077 = vpop.f32.mrb[0].mxu0
    %v1078 = vadd.f32 0.0, %v1077
    %v1079 = vpop.f32.mrb[0].mxu0
    %1080 = vdwg.mxu0
    %1081 = vrot.lane.b32.xlu0 %v781, 96
    %v1082 = vpop.permute.xlu0 %1081
    %v1085 = vsel %vm303, %v994, 0
    %v1088 = vsel %vm303, %v996, 0
    %1090 = vmatprep.subr.mxu0 0.0
    %1091 = vmatpush1.msra.mxu0 %v1082
    %1092 = vmatprep.subr.mxu0 0.0
    %1093 = vmatpush1.msra.mxu0 0.0
    %1094 = vmatprep.subr.mxu0 0.0
    %1095 = vmatpush1.msra.mxu0 0.0
    %1096 = vmatprep.subr.mxu0 0.0
    %1097 = vmatpush1.msra.mxu0 0.0
    %1098 = vmatprep.subr.mxu0 0.0
    %1099 = vmatpush1.msra.mxu0 0.0
    %1100 = vmatprep.subr.mxu0 0.0
    %1101 = vmatpush1.msra.mxu0 0.0
    %1102 = vmatprep.subr.mxu0 0.0
    %1103 = vmatpush1.msra.mxu0 0.0
    %1104 = vmatprep.subr.mxu0 0.0
    %1105 = vmatpush1.msra.mxu0 0.0
    %1106 = vmatprep.subr.mxu0 0.0
    %1107 = vmatpush1.msra.mxu0 0.0
    %1108 = vmatprep.subr.mxu0 0.0
    %1109 = vmatpush1.msra.mxu0 0.0
    %1110 = vmatprep.subr.mxu0 0.0
    %1111 = vmatpush1.msra.mxu0 0.0
    %1112 = vmatprep.subr.mxu0 0.0
    %1113 = vmatpush1.msra.mxu0 0.0
    %1114 = vmatprep.subr.mxu0 0.0
    %1115 = vmatpush1.msra.mxu0 0.0
    %1116 = vmatprep.subr.mxu0 0.0
    %1117 = vmatpush1.msra.mxu0 0.0
    %1118 = vmatprep.subr.mxu0 0.0
    %1119 = vmatpush1.msra.mxu0 0.0
    %1120 = vmatprep.subr.mxu0 0.0
    %1121 = vmatpush1.msra.mxu0 0.0
    %1122 = vmatprep.subr.mxu0 0.0
    %1123 = vmatpush1.msra.mxu0 0.0
    %1124 = vmatprep.subr.mxu0 0.0
    %1125 = vmatpush1.msra.mxu0 0.0
    %1126 = vmatprep.subr.mxu0 0.0
    %1127 = vmatpush1.msra.mxu0 0.0
    %1128 = vmatprep.subr.mxu0 0.0
    %1129 = vmatpush1.msra.mxu0 0.0
    %1130 = vmatprep.subr.mxu0 0.0
    %1131 = vmatpush1.msra.mxu0 0.0
    %1132 = vmatprep.subr.mxu0 0.0
    %1133 = vmatpush1.msra.mxu0 0.0
    %1134 = vmatprep.subr.mxu0 0.0
    %1135 = vmatpush1.msra.mxu0 0.0
    %1136 = vmatprep.subr.mxu0 0.0
    %1137 = vmatpush1.msra.mxu0 0.0
    %1138 = vmatprep.subr.mxu0 0.0
    %1139 = vmatpush1.msra.mxu0 0.0
    %1140 = vmatprep.subr.mxu0 0.0
    %1141 = vmatpush1.msra.mxu0 0.0
    %1142 = vmatprep.subr.mxu0 0.0
    %1143 = vmatpush1.msra.mxu0 0.0
    %1144 = vmatprep.subr.mxu0 0.0
    %1145 = vmatpush1.msra.mxu0 0.0
    %1146 = vmatprep.subr.mxu0 0.0
    %1147 = vmatpush1.msra.mxu0 0.0
    %1148 = vmatprep.subr.mxu0 0.0
    %1149 = vmatpush1.msra.mxu0 0.0
    %1150 = vmatprep.subr.mxu0 0.0
    %1151 = vmatpush1.msra.mxu0 0.0
    %1152 = vmatprep.subr.mxu0 0.0
    %1153 = vmatpush1.msra.mxu0 0.0
    %1154 = vmatprep.mubr.f32.mxu0 0.0
    %1155 = vmatmul.mubr.f32.gmra.mrb[0].mxu0 %v1085
    %v1156 = vpop.f32.mrb[0].mxu0
    %v1157 = vadd.f32 0.0, %v1156
    %v1158 = vpop.f32.mrb[0].mxu0
    %1159 = vmatprep.mubr.f32.mxu0 0.0
    %1160 = vmatmul.mubr.f32.gmra.mrb[0].mxu0 %v1088
    %v1161 = vpop.f32.mrb[0].mxu0
    %v1162 = vadd.f32 0.0, %v1161
    %v1163 = vpop.f32.mrb[0].mxu0
    %1164 = vdwg.mxu0
    %v1165 = vlaneseq
    %v1166 = vshrl.u32 %v1165, 7
    %v1167 = vsub.s32 2, %v1166
    %v1168 = vrot.slane %v28, %v1167
    %v1170 = vsel %vm784, %v1073, 0
    %v1173 = vsel %vm784, %v1078, 0
    %v1176 = vsel %vm784, %v1157, 0
    %v1179 = vsel %vm784, %v1162, 0
    %1181 = vmatprep.subr.mxu0 0.0
    %1182 = vmatpush1.msra.mxu0 %v24
    %1183 = vmatprep.subr.mxu0 0.0
    %1184 = vmatpush1.msra.mxu0 %v25
    %1185 = vmatprep.subr.mxu0 0.0
    %1186 = vmatpush1.msra.mxu0 %v26
    %1187 = vmatprep.subr.mxu0 0.0
    %1188 = vmatpush1.msra.mxu0 %v27
    %1189 = vmatprep.subr.mxu0 0.0
    %1190 = vmatpush1.msra.mxu0 0.0
    %1191 = vmatprep.subr.mxu0 0.0
    %1192 = vmatpush1.msra.mxu0 0.0
    %1193 = vmatprep.subr.mxu0 0.0
    %1194 = vmatpush1.msra.mxu0 0.0
    %1195 = vmatprep.subr.mxu0 0.0
    %1196 = vmatpush1.msra.mxu0 0.0
    %1197 = vmatprep.subr.mxu0 0.0
    %1198 = vmatpush1.msra.mxu0 0.0
    %1199 = vmatprep.subr.mxu0 0.0
    %1200 = vmatpush1.msra.mxu0 0.0
    %1201 = vmatprep.subr.mxu0 0.0
    %1202 = vmatpush1.msra.mxu0 0.0
    %1203 = vmatprep.subr.mxu0 0.0
    %1204 = vmatpush1.msra.mxu0 0.0
    %1205 = vmatprep.subr.mxu0 0.0
    %1206 = vmatpush1.msra.mxu0 0.0
    %1207 = vmatprep.subr.mxu0 0.0
    %1208 = vmatpush1.msra.mxu0 0.0
    %1209 = vmatprep.subr.mxu0 0.0
    %1210 = vmatpush1.msra.mxu0 0.0
    %1211 = vmatprep.subr.mxu0 0.0
    %1212 = vmatpush1.msra.mxu0 0.0
    %1213 = vmatprep.subr.mxu0 0.0
    %1214 = vmatpush1.msra.mxu0 0.0
    %1215 = vmatprep.subr.mxu0 0.0
    %1216 = vmatpush1.msra.mxu0 0.0
    %1217 = vmatprep.subr.mxu0 0.0
    %1218 = vmatpush1.msra.mxu0 0.0
    %1219 = vmatprep.subr.mxu0 0.0
    %1220 = vmatpush1.msra.mxu0 0.0
    %1221 = vmatprep.subr.mxu0 0.0
    %1222 = vmatpush1.msra.mxu0 0.0
    %1223 = vmatprep.subr.mxu0 0.0
    %1224 = vmatpush1.msra.mxu0 0.0
    %1225 = vmatprep.subr.mxu0 0.0
    %1226 = vmatpush1.msra.mxu0 0.0
    %1227 = vmatprep.subr.mxu0 0.0
    %1228 = vmatpush1.msra.mxu0 0.0
    %1229 = vmatprep.subr.mxu0 0.0
    %1230 = vmatpush1.msra.mxu0 0.0
    %1231 = vmatprep.subr.mxu0 0.0
    %1232 = vmatpush1.msra.mxu0 0.0
    %1233 = vmatprep.subr.mxu0 0.0
    %1234 = vmatpush1.msra.mxu0 0.0
    %1235 = vmatprep.subr.mxu0 0.0
    %1236 = vmatpush1.msra.mxu0 0.0
    %1237 = vmatprep.subr.mxu0 0.0
    %1238 = vmatpush1.msra.mxu0 0.0
    %1239 = vmatprep.subr.mxu0 0.0
    %1240 = vmatpush1.msra.mxu0 0.0
    %1241 = vmatprep.subr.mxu0 0.0
    %1242 = vmatpush1.msra.mxu0 0.0
    %1243 = vmatprep.subr.mxu0 0.0
    %1244 = vmatpush1.msra.mxu0 0.0
    %1245 = vmatprep.mubr.f32.mxu0 0.0
    %1246 = vmatmul.mubr.f32.gmra.mrb[0].mxu0 %v1170
    %v1247 = vpop.f32.mrb[0].mxu0
    %v1248 = vadd.f32 %v1168, %v1247
    %v1249 = vpop.f32.mrb[0].mxu0
    %1250 = vmatprep.mubr.f32.mxu0 0.0
    %1251 = vmatmul.mubr.f32.gmra.mrb[0].mxu0 %v1173
    %v1252 = vpop.f32.mrb[0].mxu0
    %v1253 = vadd.f32 %v1168, %v1252
    %v1254 = vpop.f32.mrb[0].mxu0
    %1255 = vmatprep.mubr.f32.mxu0 0.0
    %1256 = vmatmul.mubr.f32.gmra.mrb[0].mxu0 %v1176
    %v1257 = vpop.f32.mrb[0].mxu0
    %v1258 = vadd.f32 %v1168, %v1257
    %v1259 = vpop.f32.mrb[0].mxu0
    %1260 = vmatprep.mubr.f32.mxu0 0.0
    %1261 = vmatmul.mubr.f32.gmra.mrb[0].mxu0 %v1179
    %v1262 = vpop.f32.mrb[0].mxu0
    %v1263 = vadd.f32 %v1168, %v1262
    %v1264 = vpop.f32.mrb[0].mxu0
    %1265 = vdwg.mxu0
    %v1266 = vadd.f32 %v1248, %v572
    %v1267 = vadd.f32 %v1253, %v577
    %v1268 = vadd.f32 %v1258, %v582
    %v1269 = vadd.f32 %v1263, %v587
    %v1270 = vadd.f32 %v1266, %v49
    %v1271 = vadd.f32 %v1267, %v50
    %v1272 = vadd.f32 %v1268, %v81
    %v1273 = vadd.f32 %v1269, %v82
    %v1274 = vsel %vm298, %v1270, 0.0
    %v1275 = vsel %vm298, %v1271, 0.0
    %v1276 = vadd.f32 %v1274, %v1275
    %v1277 = vsel %vm298, %v1272, 0.0
    %v1278 = vadd.f32 %v1276, %v1277
    %v1279 = vsel %vm298, %v1273, 0.0
    %v1280 = vadd.f32 %v1278, %v1279
    %v1281 = vrot.slane %v1280, 4
    %v1282 = vadd.f32 %v1280, %v1281
    %v1283 = vrot.slane %v1282, 2
    %v1284 = vadd.f32 %v1282, %v1283
    %v1285 = vrot.slane %v1284, 1
    %v1286 = vadd.f32 %v1284, %v1285
    %v1287 = vrcp.pop 32.0
    %v1288 = vmul.f32 %v1286, %v1287
    %v1289 = vsub.f32 %v1270, %v1288
    %v1290 = vsub.f32 %v1271, %v1288
    %v1291 = vsub.f32 %v1272, %v1288
    %v1292 = vsub.f32 %v1273, %v1288
    %v1293 = vmul.f32 %v1289, %v1289
    %v1294 = vmul.f32 %v1290, %v1290
    %v1295 = vmul.f32 %v1291, %v1291
    %v1296 = vmul.f32 %v1292, %v1292
    %v1297 = vsel %vm298, %v1293, 0.0
    %v1298 = vsel %vm298, %v1294, 0.0
    %v1299 = vadd.f32 %v1297, %v1298
    %v1300 = vsel %vm298, %v1295, 0.0
    %v1301 = vadd.f32 %v1299, %v1300
    %v1302 = vsel %vm298, %v1296, 0.0
    %v1303 = vadd.f32 %v1301, %v1302
    %v1304 = vrot.slane %v1303, 4
    %v1305 = vadd.f32 %v1303, %v1304
    %v1306 = vrot.slane %v1305, 2
    %v1307 = vadd.f32 %v1305, %v1306
    %v1308 = vrot.slane %v1307, 1
    %v1309 = vadd.f32 %v1307, %v1308
    %v1310 = vmul.f32 %v1309, %v1287
    %v1311 = vadd.f32 %v1310, 1e-05
    %v1312 = vrsqrt.pop %v1311
    %v1313 = vmul.f32 %v1289, %v1312
    %v1314 = vmul.f32 %v1290, %v1312
    %v1315 = vmul.f32 %v1291, %v1312
    %v1316 = vmul.f32 %v1292, %v1312
    %v1317 = vlaneseq
    %v1318 = vshrl.u32 %v1317, 7
    %v1319 = vsub.s32 3, %v1318
    %v1320 = vrot.slane %v28, %v1319
    %v1321 = vmul.f32 %v1313, %v1320
    %v1322 = vmul.f32 %v1314, %v1320
    %v1323 = vmul.f32 %v1315, %v1320
    %v1324 = vmul.f32 %v1316, %v1320
    %v1325 = vlaneseq
    %v1326 = vshrl.u32 %v1325, 7
    %v1327 = vsub.s32 4, %v1326
    %v1328 = vrot.slane %v28, %v1327
    %v1329 = vadd.f32 %v1321, %v1328
    %v1330 = vadd.f32 %v1322, %v1328
    %v1331 = vadd.f32 %v1323, %v1328
    %v1332 = vadd.f32 %v1324, %v1328
    %1333 = vxpose.xlu0.b32.start [1/16] %v1329, 128
    %1334 = vxpose.xlu0.b32.cont [2/16] %v1330, 128
    %1335 = vxpose.xlu0.b32.cont [3/16] 0.0, 128
    %1336 = vxpose.xlu0.b32.cont [4/16] 0.0, 128
    %1337 = vxpose.xlu0.b32.cont [5/16] 0.0, 128
    %1338 = vxpose.xlu0.b32.cont [6/16] 0.0, 128
    %1339 = vxpose.xlu0.b32.cont [7/16] 0.0, 128
    %1340 = vxpose.xlu0.b32.cont [8/16] 0.0, 128
    %1341 = vxpose.xlu0.b32.cont [9/16] 0.0, 128
    %1342 = vxpose.xlu0.b32.cont [10/16] 0.0, 128
    %1343 = vxpose.xlu0.b32.cont [11/16] 0.0, 128
    %1344 = vxpose.xlu0.b32.cont [12/16] 0.0, 128
    %1345 = vxpose.xlu0.b32.cont [13/16] 0.0, 128
    %1346 = vxpose.xlu0.b32.cont [14/16] 0.0, 128
    %1347 = vxpose.xlu0.b32.cont [15/16] 0.0, 128
    %1348 = vxpose.xlu0.b32.end [16/16] 0.0, 128
    %v1349 = vpop.trf.xlu0
    %v1350 = vpop.trf.xlu0
    %v1351 = vpop.trf.xlu0
    %v1352 = vpop.trf.xlu0
    %v1353 = vpop.trf.xlu0
    %v1354 = vpop.trf.xlu0
    %v1355 = vpop.trf.xlu0
    %v1356 = vpop.trf.xlu0
    %v1357 = vpop.trf.xlu0
    %v1358 = vpop.trf.xlu0
    %v1359 = vpop.trf.xlu0
    %v1360 = vpop.trf.xlu0
    %v1361 = vpop.trf.xlu0
    %v1362 = vpop.trf.xlu0
    %v1363 = vpop.trf.xlu0
    %v1364 = vpop.trf.xlu0
    %1365 = vxpose.xlu0.b32.start [1/16] %v1331, 128
    %1366 = vxpose.xlu0.b32.cont [2/16] %v1332, 128
    %1367 = vxpose.xlu0.b32.cont [3/16] 0.0, 128
    %1368 = vxpose.xlu0.b32.cont [4/16] 0.0, 128
    %1369 = vxpose.xlu0.b32.cont [5/16] 0.0, 128
    %1370 = vxpose.xlu0.b32.cont [6/16] 0.0, 128
    %1371 = vxpose.xlu0.b32.cont [7/16] 0.0, 128
    %1372 = vxpose.xlu0.b32.cont [8/16] 0.0, 128
    %1373 = vxpose.xlu0.b32.cont [9/16] 0.0, 128
    %1374 = vxpose.xlu0.b32.cont [10/16] 0.0, 128
    %1375 = vxpose.xlu0.b32.cont [11/16] 0.0, 128
    %1376 = vxpose.xlu0.b32.cont [12/16] 0.0, 128
    %1377 = vxpose.xlu0.b32.cont [13/16] 0.0, 128
    %1378 = vxpose.xlu0.b32.cont [14/16] 0.0, 128
    %1379 = vxpose.xlu0.b32.cont [15/16] 0.0, 128
    %1380 = vxpose.xlu0.b32.end [16/16] 0.0, 128
    %v1381 = vpop.trf.xlu0
    %v1382 = vpop.trf.xlu0
    %v1383 = vpop.trf.xlu0
    %v1384 = vpop.trf.xlu0
    %v1385 = vpop.trf.xlu0
    %v1386 = vpop.trf.xlu0
    %v1387 = vpop.trf.xlu0
    %v1388 = vpop.trf.xlu0
    %v1389 = vpop.trf.xlu0
    %v1390 = vpop.trf.xlu0
    %v1391 = vpop.trf.xlu0
    %v1392 = vpop.trf.xlu0
    %v1393 = vpop.trf.xlu0
    %v1394 = vpop.trf.xlu0
    %v1395 = vpop.trf.xlu0
    %v1396 = vpop.trf.xlu0
    %vm1397 = vcmask 125952
    %1398 = vst.msk [vmem:[#allocation2] sm:$0xf] %vm1397, %v1349
    %1399 = vst.msk [vmem:[#allocation2 + $0x4] sm:$0xf] %vm1397, %v1381
    // Predicated region
    $region22: #{tpu_custom_call.1} parent=1 // pred_check
      _
    $region23: #{tpu_custom_call.1} parent=1 // pred_check_branch
      %1401 = sbr.rel (0) target = $region25
    $region24: #{tpu_custom_call.1} parent=1 // pred_region
      %s1403 = ssub.s32 128, 128
      %1404 = vsyncadd [#allocation3], %s1403
      %s1405 = sshll.u32 [#allocation2], 4
      %s1406 = int_to_ptr.vmem [resolvable:$true] %s1405
      %1411 = dma.vmem_to_hbm [thread:$0]  %s1406, 128, %s5, [#allocation3], 64, 64, 4
    $region25: #{tpu_custom_call.1} parent=1 // pred_fallthru
      _
    // Predicated region
    $region26: #{tpu_custom_call.1} parent=1 // pred_check
      _
    $region27: #{tpu_custom_call.1} parent=1 // pred_check_branch
      %1413 = sbr.rel (0) target = $region29
    $region28: #{tpu_custom_call.1} parent=1 // pred_region
      %1414 = dma.done [#allocation3], 128
    $region29: #{tpu_custom_call.1} parent=1 // pred_fallthru
      _
    %1415 = vsyncpa [#allocation3], 1

</llo_original>
